<compile_context>
chip_gen: v7x
topology: tpu7x:2x2x1
jax: 0.10.0
libtpu: 0.0.40
codegen_flags: <defaults>
</compile_context>

<pallas_src>
import functools

import jax
import jax.numpy as jnp
from jax.experimental import pallas as pl
from jax.experimental.pallas import tpu as pltpu

_COMPUTE_DTYPE = jnp.bfloat16


def _round_up(x, m):
    return (x + m - 1) // m * m


# ---------------------------------------------------------------------------
# Kernel
# ---------------------------------------------------------------------------
def qwen2_mlp_kernel(x_ref, wg_ref, wu_ref, wd_ref, o_ref, *scratch, ti, chunks):
    """One (TM, H) row tile x one TI slice of the intermediate dim.

    x_ref   : (TM, H)   bf16  row tile of tokens (resident across i)
    wg_ref  : (H, TI)   bf16  gate-proj weight slice (streamed)
    wu_ref  : (H, TI)   bf16  up-proj weight slice (streamed)
    wd_ref  : (TI, H)   bf16  down-proj weight slice (streamed)
    o_ref   : (TM, H)   output tile; doubles as the f32 accumulator when the
                        output dtype is float32 (block index invariant in i).
    scratch : optional (TM, H) f32 VMEM accumulator (non-f32 outputs only).
    """
    acc_ref = scratch[0] if scratch else o_ref
    i = pl.program_id(1)

    @pl.when(i == 0)
    def _():
        acc_ref[...] = jnp.zeros_like(acc_ref)

    x = x_ref[...]                                     # (TM, H) bf16
    half = ti // chunks
    # Statically-unrolled chunking of the TI slice: the SwiGLU epilogue (EUP
    # sigmoid + VPU muls + bf16 cast) of chunk c can overlap the MXU dots of
    # chunk c+1 instead of serializing dot -> epilogue -> dot.
    for c in range(chunks):
        lo = c * half
        gate = jnp.dot(x, wg_ref[:, lo:lo + half],
                       preferred_element_type=jnp.float32)      # (TM, half) f32
        up = jnp.dot(x, wu_ref[:, lo:lo + half],
                     preferred_element_type=jnp.float32)        # (TM, half) f32
        h = (gate * jax.nn.sigmoid(gate) * up).astype(wd_ref.dtype)
        acc_ref[...] += jnp.dot(h, wd_ref[lo:lo + half, :],
                                preferred_element_type=jnp.float32)

    if scratch:
        @pl.when(i == pl.num_programs(1) - 1)
        def _():
            o_ref[...] = acc_ref[...].astype(o_ref.dtype)


# ---------------------------------------------------------------------------
# Generation-aware tile / VMEM selection (pure Python, runs outside the jit)
# ---------------------------------------------------------------------------
def _tpu_vmem_capacity_bytes():
    try:
        info = pltpu.get_tpu_info()
        cap = getattr(info, "vmem_capacity_bytes", None)
        if cap:
            return int(cap)
    except Exception:
        pass
    return 64 * 1024 * 1024  # conservative fallback (v7x per-TC VMEM)


def _device_kind():
    try:
        return jax.devices()[0].device_kind.lower()
    except Exception:
        return ""


def _choose_config(M, H, I, out_dtype, tm, ti):
    vmem_cap = _tpu_vmem_capacity_bytes()
    kind = _device_kind()
    is_v7_class = ("v7" in kind) or (vmem_cap <= 72 * 2**20)

    # TM is the only knob that raises weight reuse (each weight byte gets TM
    # MXU FLOPs), so pick it at each generation's compute/HBM roofline ratio.
    if ti is None:
        ti = 512
    if tm is None:
        if is_v7_class:
            tm = 512          # v7x: ~310 bf16 FLOP/byte, 64 MiB VMEM per TC
        elif "v5" in kind:
            tm = 512          # v5e: ~240 FLOP/byte; larger only burns VMEM
        else:
            tm = 1024         # v6e: ~650-700 FLOP/byte, 128 MiB VMEM

    TM = min(tm, _round_up(M, 16))        # bf16 sublane packing = 16 rows
    TI = min(ti, _round_up(I, 128))

    # v7x has 2 TensorCores per chip: keep >= 2 steps on the "parallel" m axis
    # whenever M permits, otherwise one core idles.
    if is_v7_class and M <= TM and M >= 32:
        TM = _round_up(-(-M // 2), 16)
    # TODO(synk): for decode-sized M (< 32 rows) on v7x, add a third "parallel"
    # grid axis over columns of H so both TensorCores split the weight stream.
    # TODO(synk): v7x fp8-weight variant (fp8 weight stream, bf16 activations,
    # f32 accumulation) would halve weight HBM traffic in BW-bound regimes.

    use_scratch = out_dtype != jnp.float32
    out_b = jnp.dtype(out_dtype).itemsize
    bf16_b, f32_b = 2, 4

    def estimate(tm_, ti_):
        return (
            2 * tm_ * H * bf16_b                         # x tile (double-buffered)
            + 2 * H * ti_ * bf16_b * 2                   # wg + wu weight tiles
            + 2 * ti_ * H * bf16_b                       # down-proj weight tile
            + 2 * tm_ * H * out_b                        # output tile
            + (tm_ * H * f32_b if use_scratch else 0)    # f32 accumulator scratch
            + 2 * tm_ * ti_ * f32_b                      # in-flight gate/up f32
        )

    budget = vmem_cap - 8 * 2**20        # ~8 MiB headroom for compiler scratch
    # Shrink TI first (weight-stream granularity), then TM, until the estimate
    # fits the chip's physical VMEM.
    while estimate(TM, TI) > budget and (TI > 256 or TM > 256):
        if TI > 256:
            TI = max(256, TI // 2)
        else:
            TM = max(256, TM // 2)

    chunks = 2 if (TI >= 256 and TI % 256 == 0) else 1
    vmem_limit = int(min(budget, max(32 * 2**20, estimate(TM, TI) * 5 // 4)))
    return TM, TI, chunks, vmem_limit


# ---------------------------------------------------------------------------
# Wrapper
# ---------------------------------------------------------------------------
@functools.partial(jax.jit, static_argnames=("tm", "ti", "chunks", "vmem_limit"))
def _qwen2_mlp_core(x, wg, wu, wd, *, tm, ti, chunks, vmem_limit):
    B, S, H = x.shape
    I = wd.shape[0]
    M = B * S
    out_dtype = x.dtype
    use_scratch = out_dtype != jnp.float32

    M_pad = _round_up(M, tm)
    I_pad = _round_up(I, ti)

    x2 = x.reshape(M, H).astype(_COMPUTE_DTYPE)
    if M_pad != M:
        x2 = jnp.pad(x2, ((0, M_pad - M), (0, 0)))

    # Weights should already be bf16 / I-padded (prepare_qwen2_mlp_weights);
    # in that case these branches are trace-time no-ops and the per-call hot
    # path does no weight-sized HBM work.
    if wg.dtype != _COMPUTE_DTYPE:
        wg = wg.astype(_COMPUTE_DTYPE)
    if wu.dtype != _COMPUTE_DTYPE:
        wu = wu.astype(_COMPUTE_DTYPE)
    if wd.dtype != _COMPUTE_DTYPE:
        wd = wd.astype(_COMPUTE_DTYPE)
    if I_pad != I:
        wg = jnp.pad(wg, ((0, 0), (0, I_pad - I)))
        wu = jnp.pad(wu, ((0, 0), (0, I_pad - I)))
        wd = jnp.pad(wd, ((0, I_pad - I), (0, 0)))

    scratch_shapes = (pltpu.VMEM((tm, H), jnp.float32),) if use_scratch else ()

    out2 = pl.pallas_call(
        functools.partial(qwen2_mlp_kernel, ti=ti, chunks=chunks),
        out_shape=jax.ShapeDtypeStruct((M_pad, H), out_dtype),
        grid_spec=pltpu.PrefetchScalarGridSpec(
            num_scalar_prefetch=0,
            grid=(M_pad // tm, I_pad // ti),
            in_specs=[
                pl.BlockSpec((tm, H), lambda m, i: (m, 0)),    # x row tile
                pl.BlockSpec((H, ti), lambda m, i: (0, i)),    # gate-proj slice
                pl.BlockSpec((H, ti), lambda m, i: (0, i)),    # up-proj slice
                pl.BlockSpec((ti, H), lambda m, i: (i, 0)),    # down-proj slice
            ],
            out_specs=pl.BlockSpec((tm, H), lambda m, i: (m, 0)),
            scratch_shapes=scratch_shapes,
        ),
        compiler_params=pltpu.CompilerParams(
            dimension_semantics=("parallel", "arbitrary"),
            vmem_limit_bytes=vmem_limit),
    )(x2, wg, wu, wd)

    if M_pad != M:
        out2 = out2[:M]
    return out2.reshape(B, S, H)


def prepare_qwen2_mlp_weights(wg, wu, wd, *, ti=512):
    """One-time (model-init) weight prep: bf16 cast + pad I to the TI grid.

    Call this once and reuse the result; the per-call path then does no
    weight-sized cast / pad / HBM round-trip.
    """
    I = wg.shape[1]
    I_pad = _round_up(I, ti)
    wg = wg.astype(_COMPUTE_DTYPE)
    wu = wu.astype(_COMPUTE_DTYPE)
    wd = wd.astype(_COMPUTE_DTYPE)
    if I_pad != I:
        wg = jnp.pad(wg, ((0, 0), (0, I_pad - I)))
        wu = jnp.pad(wu, ((0, 0), (0, I_pad - I)))
        wd = jnp.pad(wd, ((0, I_pad - I), (0, 0)))
    return wg, wu, wd


def qwen2_mlp(x, wg, wu, wd, *, tm=None, ti=None):
    """SwiGLU MLP: down_proj(silu(x @ wg) * (x @ wu)).

    x: (B, S, H).  wg, wu: (H, I).  wd: (I, H)  (pre-transposed vs nn.Linear).
    Returns (B, S, H) in x.dtype.  Pass weights through
    prepare_qwen2_mlp_weights() once at init for the fast path.
    """
    B, S, H = x.shape
    I = wd.shape[0]
    M = B * S
    TM, TI, chunks, vmem_limit = _choose_config(M, H, I, x.dtype, tm, ti)
    return _qwen2_mlp_core(x, wg, wu, wd, tm=TM, ti=TI, chunks=chunks,
                           vmem_limit=vmem_limit)


def _reference_bf16(x, wg, wu, wd):
    """Reference matching the kernel's bf16-input / f32-accum numerics."""
    B, S, H = x.shape
    xb = x.reshape(-1, H).astype(jnp.bfloat16)
    gate = jnp.dot(xb, wg.astype(jnp.bfloat16),
                   preferred_element_type=jnp.float32)
    up = jnp.dot(xb, wu.astype(jnp.bfloat16),
                 preferred_element_type=jnp.float32)
    h = (gate * jax.nn.sigmoid(gate) * up).astype(jnp.bfloat16)
    out = jnp.dot(h, wd.astype(jnp.bfloat16),
                  preferred_element_type=jnp.float32)
    return out.reshape(B, S, -1).astype(x.dtype)


if __name__ == "__main__":
    # Small config consistent with the module (hidden_act="silu"), lane-aligned
    # and with intermediate_size > TI so the streamed-K path (n_i >= 2) and the
    # chunked SwiGLU epilogue are exercised.
    batch, seq = 2, 8
    hidden_size = 256
    intermediate_size = 1024

    key = jax.random.PRNGKey(0)
    kx, kg, ku, kd = jax.random.split(key, 4)

    x = jax.random.normal(kx, (batch, seq, hidden_size), dtype=jnp.float32)
    # Deterministic synthetic weights, stored pre-transposed vs nn.Linear.
    wg = jax.random.normal(kg, (hidden_size, intermediate_size),
                           dtype=jnp.float32) * (1.0 / hidden_size ** 0.5)
    wu = jax.random.normal(ku, (hidden_size, intermediate_size),
                           dtype=jnp.float32) * (1.0 / hidden_size ** 0.5)
    wd = jax.random.normal(kd, (intermediate_size, hidden_size),
                           dtype=jnp.float32) * (1.0 / intermediate_size ** 0.5)

    # One-time weight prep (bf16 cast / padding) outside the per-call hot path.
    wg_p, wu_p, wd_p = prepare_qwen2_mlp_weights(wg, wu, wd)

    out = qwen2_mlp(x, wg_p, wu_p, wd_p)
    jax.block_until_ready(out)

    ref = _reference_bf16(x, wg, wu, wd)
    assert out.shape == (batch, seq, hidden_size)
    assert out.dtype == x.dtype
    assert jnp.allclose(out, ref, atol=1e-2, rtol=1e-2), "mismatch vs reference"

    print("KERNEL_OK")
</pallas_src>

<mosaic_0001>
module attributes {stable_mosaic.version = 11 : i64} {
  func.func @qwen2_mlp_kernel(%arg0: i32, %arg1: i32, %arg2: memref<16x256xbf16, #tpu.memory_space<vmem>>, %arg3: memref<256x512xbf16, #tpu.memory_space<vmem>>, %arg4: memref<256x512xbf16, #tpu.memory_space<vmem>>, %arg5: memref<512x256xbf16, #tpu.memory_space<vmem>>, %arg6: memref<16x256xf32, #tpu.memory_space<vmem>>) attributes {dimension_semantics = [#tpu.dimension_semantics<parallel>, #tpu.dimension_semantics<arbitrary>], iteration_bounds = array<i64: 1, 2>, scalar_prefetch = 0 : i64, scratch_operands = 0 : i64, tpu.core_type = #tpu.core_type<tc>, window_params = [{transform_indices = @transform_0, window_bounds = array<i64: 16, 256>}, {transform_indices = @transform_1, window_bounds = array<i64: 256, 512>}, {transform_indices = @transform_2, window_bounds = array<i64: 256, 512>}, {transform_indices = @transform_3, window_bounds = array<i64: 512, 256>}, {transform_indices = @transform_4, window_bounds = array<i64: 16, 256>}]} {
    %c0_i32 = arith.constant 0 : i32
    %0 = arith.cmpi eq, %arg1, %c0_i32 : i32
    %1 = arith.extui %0 : i1 to i32
    %c0_i32_0 = arith.constant 0 : i32
    %2 = arith.cmpi ne, %1, %c0_i32_0 : i32
    scf.if %2 {
      %cst_28 = arith.constant 0.000000e+00 : f32
      %38 = vector.broadcast %cst_28 : f32 to vector<16x256xf32>
      %c0_29 = arith.constant 0 : index
      %c0_30 = arith.constant 0 : index
      %39 = vector.load %arg6[%c0_29, %c0_30] : memref<16x256xf32, #tpu.memory_space<vmem>>, vector<16x256xf32>
      tpu.vector_store %arg6[%c0_29, %c0_30], %38 {strides = array<i32>} : memref<16x256xf32, #tpu.memory_space<vmem>>, vector<16x256xf32>,
    } else {
    }
    %c0 = arith.constant 0 : index
    %c0_1 = arith.constant 0 : index
    %3 = vector.load %arg2[%c0, %c0_1] : memref<16x256xbf16, #tpu.memory_space<vmem>>, vector<16x256xbf16>
    %c0_2 = arith.constant 0 : index
    %c0_3 = arith.constant 0 : index
    %4 = vector.load %arg3[%c0_2, %c0_3] : memref<256x512xbf16, #tpu.memory_space<vmem>>, vector<256x256xbf16>
    %cst = arith.constant dense<0.000000e+00> : vector<16x256xf32>
    %5 = tpu.matmul %3, %4, %cst {dimension_numbers = #tpu.dot_dimension_numbers<[1], [0], [0], [1], [0, 0, 1, 1], [], []>} : vector<16x256xbf16>, vector<256x256xbf16>, vector<16x256xf32> -> vector<16x256xf32>
    %c0_4 = arith.constant 0 : index
    %c0_5 = arith.constant 0 : index
    %6 = vector.load %arg4[%c0_4, %c0_5] : memref<256x512xbf16, #tpu.memory_space<vmem>>, vector<256x256xbf16>
    %cst_6 = arith.constant dense<0.000000e+00> : vector<16x256xf32>
    %7 = tpu.matmul %3, %6, %cst_6 {dimension_numbers = #tpu.dot_dimension_numbers<[1], [0], [0], [1], [0, 0, 1, 1], [], []>} : vector<16x256xbf16>, vector<256x256xbf16>, vector<16x256xf32> -> vector<16x256xf32>
    %8 = arith.negf %5 : vector<16x256xf32>
    %9 = math.exp %8 : vector<16x256xf32>
    %cst_7 = arith.constant 1.000000e+00 : f32
    %10 = vector.broadcast %cst_7 : f32 to vector<16x256xf32>
    %11 = arith.addf %10, %9 : vector<16x256xf32>
    %12 = arith.divf %10, %11 : vector<16x256xf32>
    %13 = arith.mulf %5, %12 : vector<16x256xf32>
    %14 = arith.mulf %13, %7 : vector<16x256xf32>
    %15 = arith.truncf %14 : vector<16x256xf32> to vector<16x256xbf16>
    %c0_8 = arith.constant 0 : index
    %c0_9 = arith.constant 0 : index
    %16 = vector.load %arg6[%c0_8, %c0_9] : memref<16x256xf32, #tpu.memory_space<vmem>>, vector<16x256xf32>
    %c0_10 = arith.constant 0 : index
    %c0_11 = arith.constant 0 : index
    %17 = vector.load %arg5[%c0_10, %c0_11] : memref<512x256xbf16, #tpu.memory_space<vmem>>, vector<256x256xbf16>
    %cst_12 = arith.constant dense<0.000000e+00> : vector<16x256xf32>
    %18 = tpu.matmul %15, %17, %cst_12 {dimension_numbers = #tpu.dot_dimension_numbers<[1], [0], [0], [1], [0, 0, 1, 1], [], []>} : vector<16x256xbf16>, vector<256x256xbf16>, vector<16x256xf32> -> vector<16x256xf32>
    %19 = arith.addf %16, %18 : vector<16x256xf32>
    %c0_13 = arith.constant 0 : index
    %c0_14 = arith.constant 0 : index
    %20 = vector.load %arg6[%c0_13, %c0_14] : memref<16x256xf32, #tpu.memory_space<vmem>>, vector<16x256xf32>
    tpu.vector_store %arg6[%c0_13, %c0_14], %19 {strides = array<i32>} : memref<16x256xf32, #tpu.memory_space<vmem>>, vector<16x256xf32>,
    %c0_15 = arith.constant 0 : index
    %c256 = arith.constant 256 : index
    %21 = vector.load %arg3[%c0_15, %c256] : memref<256x512xbf16, #tpu.memory_space<vmem>>, vector<256x256xbf16>
    %cst_16 = arith.constant dense<0.000000e+00> : vector<16x256xf32>
    %22 = tpu.matmul %3, %21, %cst_16 {dimension_numbers = #tpu.dot_dimension_numbers<[1], [0], [0], [1], [0, 0, 1, 1], [], []>} : vector<16x256xbf16>, vector<256x256xbf16>, vector<16x256xf32> -> vector<16x256xf32>
    %c0_17 = arith.constant 0 : index
    %c256_18 = arith.constant 256 : index
    %23 = vector.load %arg4[%c0_17, %c256_18] : memref<256x512xbf16, #tpu.memory_space<vmem>>, vector<256x256xbf16>
    %cst_19 = arith.constant dense<0.000000e+00> : vector<16x256xf32>
    %24 = tpu.matmul %3, %23, %cst_19 {dimension_numbers = #tpu.dot_dimension_numbers<[1], [0], [0], [1], [0, 0, 1, 1], [], []>} : vector<16x256xbf16>, vector<256x256xbf16>, vector<16x256xf32> -> vector<16x256xf32>
    %25 = arith.negf %22 : vector<16x256xf32>
    %26 = math.exp %25 : vector<16x256xf32>
    %cst_20 = arith.constant 1.000000e+00 : f32
    %27 = vector.broadcast %cst_20 : f32 to vector<16x256xf32>
    %28 = arith.addf %27, %26 : vector<16x256xf32>
    %29 = arith.divf %27, %28 : vector<16x256xf32>
    %30 = arith.mulf %22, %29 : vector<16x256xf32>
    %31 = arith.mulf %30, %24 : vector<16x256xf32>
    %32 = arith.truncf %31 : vector<16x256xf32> to vector<16x256xbf16>
    %c0_21 = arith.constant 0 : index
    %c0_22 = arith.constant 0 : index
    %33 = vector.load %arg6[%c0_21, %c0_22] : memref<16x256xf32, #tpu.memory_space<vmem>>, vector<16x256xf32>
    %c256_23 = arith.constant 256 : index
    %c0_24 = arith.constant 0 : index
    %34 = vector.load %arg5[%c256_23, %c0_24] : memref<512x256xbf16, #tpu.memory_space<vmem>>, vector<256x256xbf16>
    %cst_25 = arith.constant dense<0.000000e+00> : vector<16x256xf32>
    %35 = tpu.matmul %32, %34, %cst_25 {dimension_numbers = #tpu.dot_dimension_numbers<[1], [0], [0], [1], [0, 0, 1, 1], [], []>} : vector<16x256xbf16>, vector<256x256xbf16>, vector<16x256xf32> -> vector<16x256xf32>
    %36 = arith.addf %33, %35 : vector<16x256xf32>
    %c0_26 = arith.constant 0 : index
    %c0_27 = arith.constant 0 : index
    %37 = vector.load %arg6[%c0_26, %c0_27] : memref<16x256xf32, #tpu.memory_space<vmem>>, vector<16x256xf32>
    tpu.vector_store %arg6[%c0_26, %c0_27], %36 {strides = array<i32>} : memref<16x256xf32, #tpu.memory_space<vmem>>, vector<16x256xf32>,
    return
  }
  func.func @transform_0(%arg0: i32, %arg1: i32) -> (i32, i32) {
    %c0_i32 = arith.constant 0 : i32
    %c0_i32_0 = arith.constant 0 : i32
    return %arg0, %c0_i32 : i32, i32
  }
  func.func @transform_1(%arg0: i32, %arg1: i32) -> (i32, i32) {
    %c0_i32 = arith.constant 0 : i32
    %c0_i32_0 = arith.constant 0 : i32
    return %c0_i32, %arg1 : i32, i32
  }
  func.func @transform_2(%arg0: i32, %arg1: i32) -> (i32, i32) {
    %c0_i32 = arith.constant 0 : i32
    %c0_i32_0 = arith.constant 0 : i32
    return %c0_i32, %arg1 : i32, i32
  }
  func.func @transform_3(%arg0: i32, %arg1: i32) -> (i32, i32) {
    %c0_i32 = arith.constant 0 : i32
    %c0_i32_0 = arith.constant 0 : i32
    return %arg1, %c0_i32 : i32, i32
  }
  func.func @transform_4(%arg0: i32, %arg1: i32) -> (i32, i32) {
    %c0_i32 = arith.constant 0 : i32
    %c0_i32_0 = arith.constant 0 : i32
    return %arg0, %c0_i32 : i32, i32
  }
}

</mosaic_0001>

<llo_original>
// kernel: _qwen2_mlp_core.1
$region0: #{_qwen2_mlp_core.1}
  #allocation0 [shape = 'u32[]', space=smem, size = 0x4, offset = 0x4, fixed_abs, tag = 'smem constant byte address 0x4 - core index']
  #allocation1 [shape = 'u32[144,128]{1,0:T(1,128)}', space=vmem, size = 0x12000, scoped, tag = 'internal scratch']
  %s0 = inlined_call_operand.vmem [shape: bf16[16,256], index: 0, kind: input, shape index: {}]
  %s1 = inlined_call_operand.hbm [shape: bf16[256,1024], index: 1, kind: input, shape index: {}]
  %s2 = inlined_call_operand.hbm [shape: bf16[256,1024], index: 2, kind: input, shape index: {}]
  %s3 = inlined_call_operand.hbm [shape: bf16[1024,256], index: 3, kind: input, shape index: {}]
  %s4 = inlined_call_operand.hbm [shape: f32[16,256], index: 4, kind: output, shape index: {}]
  %s5 = sld [smem:[#allocation0]]
  $region65: #{_qwen2_mlp_core.1} parent=0
    _
  %s7 = ssub.s32 1, %s5
  %s8 = scalar_select 0, %s7, %s5
  $region1: #{_qwen2_mlp_core.1} parent=0
    #allocation2 [shape = 'u8[524288]{0}', space=vmem, size = 0x80000, scoped, tag = 'input window, operand 1']
    #allocation3 [shape = 's32[2]{0}', space=sflag, size = 0x8, scoped, tag = 'scoped memory for _qwen2_mlp_core.1']
    #allocation4 [shape = 's32[2]{0}', space=sflag, size = 0x8, scoped, tag = 'scoped memory for _qwen2_mlp_core.1']
    #allocation5 [shape = 'u8[524288]{0}', space=vmem, size = 0x80000, scoped, tag = 'input window, operand 2']
    #allocation6 [shape = 's32[2]{0}', space=sflag, size = 0x8, scoped, tag = 'scoped memory for _qwen2_mlp_core.1']
    #allocation7 [shape = 'u8[524288]{0}', space=vmem, size = 0x80000, scoped, tag = 'input window, operand 3']
    #allocation8 [shape = 'u8[16384]{0}', space=vmem, size = 0x4000, scoped, tag = 'output window, operand 0, single buffered']
    %9 = vsyncpa [#allocation3], 0
    %s10 = scalar_lea.sflag [#allocation3], 1
    %11 = vsyncpa %s10, 0
    %12 = vsyncpa [#allocation6], 0
    %s13 = scalar_lea.sflag [#allocation6], 1
    %14 = vsyncpa %s13, 0
    %15 = vsyncpa [#allocation4], 0
    loop: start=0, step=1, limit=4
    $region2: #{_qwen2_mlp_core.1} parent=1 // loop_pre_header
      _
    $region3: #{_qwen2_mlp_core.1} parent=1 // loop_header
      %s17 = sphi 0, %s21
      %p18 = scmp.ge.s32.totalorder %s17, 4
      %s24 = sphi 0, %s36
      %s25 = sphi 0, %s32
      %s26 = sphi 0, %s24
      %s27 = sphi 0, %s25
      %s28 = sphi 0, %s26
      %s29 = sphi 0, %s27
      %s39 = sphi 0, %s41
      %s42 = sphi 0, %s39
      %s43 = sphi 0, %s42
      %s59 = sphi 0, %s43
      %s65 = sphi 0, %s67
      %s68 = sphi 0, %s65
      %s69 = sphi 0, %s68
      %s85 = sphi 0, %s69
      %s91 = sphi 0, %s93
      %s94 = sphi 0, %s91
      %s95 = sphi 0, %s94
      %s111 = sphi 0, %s95
      %s117 = sphi 0, %s119
      %s120 = sphi 0, %s117
      %s121 = sphi 0, %s120
      %s137 = sphi 0, %s121
      %s143 = sphi 0, %s145
      %s146 = sphi 0, %s143
      %s147 = sphi 0, %s146
      %s163 = sphi 0, %s147
    $region4: #{_qwen2_mlp_core.1} parent=1 // loop_header_branch
      %20 = sbr.rel (%p18) target = $region8
    $region5: #{_qwen2_mlp_core.1} parent=1 // loop_body
      %s22 = ssub.s32 %s17, 1
      %s23 = ssub.s32 %s17, 2
      %s30 = sadd.s32 1, %s25
      %p31 = scmp.ge.s32.totalorder %s30, 2
      %s32 = scalar_select %p31, 0, %s30
      %s33 = sadd.s32 1, %s24
      %s34 = scalar_select %p31, %s33, %s24
      %p35 = scmp.ge.s32.totalorder %s34, 1
      %s36 = scalar_select %p35, 0, %s34
      %s37 = ssub.s32 %s24, %s36
      %p38 = scmp.eq.s32.totalorder %s37, 0
      %s40 = sadd.s32 %s39, 1
      %s41 = scalar_select %p38, %s39, %s40
      %p44 = pneg %p38
      %p45 = scmp.eq.s32.totalorder %s17, 1
      %p46 = por %p44, %p45
      %p47 = scmp.ne.s32.totalorder %s39, %s42
      %p48 = scmp.eq.s32.totalorder %s17, 0
      %p49 = por %p47, %p48
      %p50 = scmp.ne.s32.totalorder %s39, %s42
      %p51 = scmp.eq.s32.totalorder %s22, 1
      %p52 = por %p50, %p51
      %p53 = scmp.ne.s32.totalorder %s42, %s43
      %p54 = scmp.eq.s32.totalorder %s22, 0
      %p55 = por %p53, %p54
      %p56 = scmp.ne.s32.totalorder %s42, %s43
      %p57 = scmp.eq.s32.totalorder %s23, 1
      %p58 = por %p56, %p57
      %p60 = scmp.ne.s32.totalorder %s43, %s59
      %p61 = scmp.eq.s32.totalorder %s23, 0
      %p62 = por %p60, %p61
      %s63 = ssub.s32 %s25, %s32
      %p64 = scmp.eq.s32.totalorder %s63, 0
      %s66 = sadd.s32 %s65, 1
      %s67 = scalar_select %p64, %s65, %s66
      %p70 = pneg %p64
      %p71 = scmp.eq.s32.totalorder %s17, 1
      %p72 = por %p70, %p71
      %p73 = scmp.ne.s32.totalorder %s65, %s68
      %p74 = scmp.eq.s32.totalorder %s17, 0
      %p75 = por %p73, %p74
      %p76 = scmp.ne.s32.totalorder %s65, %s68
      %p77 = scmp.eq.s32.totalorder %s22, 1
      %p78 = por %p76, %p77
      %p79 = scmp.ne.s32.totalorder %s68, %s69
      %p80 = scmp.eq.s32.totalorder %s22, 0
      %p81 = por %p79, %p80
      %p82 = scmp.ne.s32.totalorder %s68, %s69
      %p83 = scmp.eq.s32.totalorder %s23, 1
      %p84 = por %p82, %p83
      %p86 = scmp.ne.s32.totalorder %s69, %s85
      %p87 = scmp.eq.s32.totalorder %s23, 0
      %p88 = por %p86, %p87
      %s89 = ssub.s32 %s25, %s32
      %p90 = scmp.eq.s32.totalorder %s89, 0
      %s92 = sadd.s32 %s91, 1
      %s93 = scalar_select %p90, %s91, %s92
      %p96 = pneg %p90
      %p97 = scmp.eq.s32.totalorder %s17, 1
      %p98 = por %p96, %p97
      %p99 = scmp.ne.s32.totalorder %s91, %s94
      %p100 = scmp.eq.s32.totalorder %s17, 0
      %p101 = por %p99, %p100
      %p102 = scmp.ne.s32.totalorder %s91, %s94
      %p103 = scmp.eq.s32.totalorder %s22, 1
      %p104 = por %p102, %p103
      %p105 = scmp.ne.s32.totalorder %s94, %s95
      %p106 = scmp.eq.s32.totalorder %s22, 0
      %p107 = por %p105, %p106
      %p108 = scmp.ne.s32.totalorder %s94, %s95
      %p109 = scmp.eq.s32.totalorder %s23, 1
      %p110 = por %p108, %p109
      %p112 = scmp.ne.s32.totalorder %s95, %s111
      %p113 = scmp.eq.s32.totalorder %s23, 0
      %p114 = por %p112, %p113
      %s115 = ssub.s32 %s25, %s32
      %p116 = scmp.eq.s32.totalorder %s115, 0
      %s118 = sadd.s32 %s117, 1
      %s119 = scalar_select %p116, %s117, %s118
      %p122 = pneg %p116
      %p123 = scmp.eq.s32.totalorder %s17, 1
      %p124 = por %p122, %p123
      %p125 = scmp.ne.s32.totalorder %s117, %s120
      %p126 = scmp.eq.s32.totalorder %s17, 0
      %p127 = por %p125, %p126
      %p128 = scmp.ne.s32.totalorder %s117, %s120
      %p129 = scmp.eq.s32.totalorder %s22, 1
      %p130 = por %p128, %p129
      %p131 = scmp.ne.s32.totalorder %s120, %s121
      %p132 = scmp.eq.s32.totalorder %s22, 0
      %p133 = por %p131, %p132
      %p134 = scmp.ne.s32.totalorder %s120, %s121
      %p135 = scmp.eq.s32.totalorder %s23, 1
      %p136 = por %p134, %p135
      %p138 = scmp.ne.s32.totalorder %s121, %s137
      %p139 = scmp.eq.s32.totalorder %s23, 0
      %p140 = por %p138, %p139
      %s141 = ssub.s32 %s24, %s36
      %p142 = scmp.eq.s32.totalorder %s141, 0
      %s144 = sadd.s32 %s143, 1
      %s145 = scalar_select %p142, %s143, %s144
      %p148 = pneg %p142
      %p149 = scmp.eq.s32.totalorder %s17, 1
      %p150 = por %p148, %p149
      %p151 = scmp.ne.s32.totalorder %s143, %s146
      %p152 = scmp.eq.s32.totalorder %s17, 0
      %p153 = por %p151, %p152
      %p154 = scmp.ne.s32.totalorder %s143, %s146
      %p155 = scmp.eq.s32.totalorder %s22, 1
      %p156 = por %p154, %p155
      %p157 = scmp.ne.s32.totalorder %s146, %s147
      %p158 = scmp.eq.s32.totalorder %s22, 0
      %p159 = por %p157, %p158
      %p160 = scmp.ne.s32.totalorder %s146, %s147
      %p161 = scmp.eq.s32.totalorder %s23, 1
      %p162 = por %p160, %p161
      %p164 = scmp.ne.s32.totalorder %s147, %s163
      %p165 = scmp.eq.s32.totalorder %s23, 0
      %p166 = por %p164, %p165
      %p167 = scmp.le.s32.totalorder 1, %s17
      %p168 = scmp.lt.s32.totalorder %s17, 3
      %p169 = pnand %p167, %p168
      %p170 = pneg %p169
      // Predicated region
      $region9: #{_qwen2_mlp_core.1} parent=5 // pred_check
        _
      $region10: #{_qwen2_mlp_core.1} parent=5 // pred_check_branch
        %172 = sbr.rel (%p169) target = $region12
      $region11: #{_qwen2_mlp_core.1} parent=5 // pred_region
        %s173 = ssub.s32 %s17, 1
        // Predicated region
        $region13: #{_qwen2_mlp_core.1} parent=11 // pred_check
          %p174 = pneg %p55
        $region14: #{_qwen2_mlp_core.1} parent=11 // pred_check_branch
          %176 = sbr.rel (%p174) target = $region16
        $region15: #{_qwen2_mlp_core.1} parent=11 // pred_region
          %s177 = smul.u32 2, %s26
          %p178 = scmp.lt.s32.totalorder %s177, 1
          %s179 = scalar_select %p178, %s177, 1
          %s180 = smul.addr %s179, 2
          %s181 = smul.addr %s180, 4
          %s182 = scalar_lea.vmem %s0, %s181
          %s183 = smul.u32 2, %s26
        $region16: #{_qwen2_mlp_core.1} parent=11 // pred_fallthru
          _
      $region12: #{_qwen2_mlp_core.1} parent=5 // pred_fallthru
        _
      %p184 = scmp.lt.s32.totalorder %s17, 2
      // Predicated region
      $region17: #{_qwen2_mlp_core.1} parent=5 // pred_check
        %p185 = pneg %p184
      $region18: #{_qwen2_mlp_core.1} parent=5 // pred_check_branch
        %187 = sbr.rel (%p185) target = $region20
      $region19: #{_qwen2_mlp_core.1} parent=5 // pred_region
        // Predicated region
        $region21: #{_qwen2_mlp_core.1} parent=19 // pred_check
          %p188 = pneg %p75
        $region22: #{_qwen2_mlp_core.1} parent=19 // pred_check_branch
          %190 = sbr.rel (%p188) target = $region24
        $region23: #{_qwen2_mlp_core.1} parent=19 // pred_region
          %s191 = sand.u32 %s65, 1
          %s192 = scalar_lea.sflag [#allocation3], %s191
          %s193 = sand.u32 %s65, 1
          %s194 = smul.addr %s193, 512
          %s195 = scalar_lea.vmem [#allocation2], %s194
          %s196 = smul.u32 4, %s25
          %s198 = ssub.s32 8192, 8192
          %199 = vsyncadd %s192, %s198
          %s200 = smul.addr %s196, 64
          %s201 = scalar_lea.hbm %s1, %s200
          %s202 = sshll.u32 %s195, 4
          %s203 = int_to_ptr.vmem [resolvable:$true] %s202
          %208 = dma.hbm_to_vmem [thread:$0]  %s201, 8192, %s203, %s192, 512, 256, 16
        $region24: #{_qwen2_mlp_core.1} parent=19 // pred_fallthru
          _
        // Predicated region
        $region25: #{_qwen2_mlp_core.1} parent=19 // pred_check
          %p209 = pneg %p101
        $region26: #{_qwen2_mlp_core.1} parent=19 // pred_check_branch
          %211 = sbr.rel (%p209) target = $region28
        $region27: #{_qwen2_mlp_core.1} parent=19 // pred_region
          %s212 = sand.u32 %s17, 1
          %s213 = scalar_lea.sflag [#allocation6], %s212
          %s214 = sand.u32 %s91, 1
          %s215 = smul.addr %s214, 512
          %s216 = scalar_lea.vmem [#allocation5], %s215
          %s217 = smul.u32 4, %s25
          %s219 = ssub.s32 8192, 8192
          %220 = vsyncadd %s213, %s219
          %s221 = smul.addr %s217, 64
          %s222 = scalar_lea.hbm %s2, %s221
          %s223 = sshll.u32 %s216, 4
          %s224 = int_to_ptr.vmem [resolvable:$true] %s223
          %229 = dma.hbm_to_vmem [thread:$0]  %s222, 8192, %s224, %s213, 512, 256, 16
        $region28: #{_qwen2_mlp_core.1} parent=19 // pred_fallthru
          _
        // Predicated region
        $region29: #{_qwen2_mlp_core.1} parent=19 // pred_check
          %p230 = pneg %p127
        $region30: #{_qwen2_mlp_core.1} parent=19 // pred_check_branch
          %232 = sbr.rel (%p230) target = $region32
        $region31: #{_qwen2_mlp_core.1} parent=19 // pred_region
          %s233 = sand.u32 %s17, 1
          %s234 = scalar_lea.sflag [#allocation6], %s233
          %s235 = sand.u32 %s117, 1
          %s236 = smul.addr %s235, 512
          %s237 = scalar_lea.vmem [#allocation7], %s236
          %s238 = smul.u32 64, %s25
          %s240 = ssub.s32 8192, 8192
          %241 = vsyncadd %s234, %s240
          %s242 = smul.addr %s238, 2
          %s243 = smul.addr %s242, 64
          %s244 = scalar_lea.hbm %s3, %s243
          %s245 = sshll.u32 %s237, 4
          %s246 = int_to_ptr.vmem [resolvable:$true] %s245
          %251 = dma.hbm_to_vmem [thread:$0]  %s244, 8192, %s246, %s234, 128, 128, 8
        $region32: #{_qwen2_mlp_core.1} parent=19 // pred_fallthru
          _
      $region20: #{_qwen2_mlp_core.1} parent=5 // pred_fallthru
        _
      %p252 = scmp.le.s32.totalorder 1, %s17
      %p253 = scmp.lt.s32.totalorder %s17, 3
      %p254 = pnand %p252, %p253
      %p255 = pneg %p254
      // Predicated region
      $region33: #{_qwen2_mlp_core.1} parent=5 // pred_check
        _
      $region34: #{_qwen2_mlp_core.1} parent=5 // pred_check_branch
        %257 = sbr.rel (%p254) target = $region36
      $region35: #{_qwen2_mlp_core.1} parent=5 // pred_region
        %s258 = ssub.s32 %s17, 1
        %s259 = sand.u32 %s68, 1
        %s260 = scalar_lea.sflag [#allocation3], %s259
        %s261 = sand.u32 %s68, 1
        %s262 = smul.addr %s261, 512
        %s263 = scalar_lea.vmem [#allocation2], %s262
        // Predicated region
        $region37: #{_qwen2_mlp_core.1} parent=35 // pred_check
          %p264 = pneg %p81
        $region38: #{_qwen2_mlp_core.1} parent=35 // pred_check_branch
          %266 = sbr.rel (%p264) target = $region40
        $region39: #{_qwen2_mlp_core.1} parent=35 // pred_region
          %267 = dma.done %s260, 8192
        $region40: #{_qwen2_mlp_core.1} parent=35 // pred_fallthru
          _
        %s268 = sand.u32 %s22, 1
        %s269 = scalar_lea.sflag [#allocation6], %s268
        %s270 = sand.u32 %s94, 1
        %s271 = smul.addr %s270, 512
        %s272 = scalar_lea.vmem [#allocation5], %s271
        // Predicated region
        $region41: #{_qwen2_mlp_core.1} parent=35 // pred_check
          %p273 = pneg %p107
        $region42: #{_qwen2_mlp_core.1} parent=35 // pred_check_branch
          %275 = sbr.rel (%p273) target = $region44
        $region43: #{_qwen2_mlp_core.1} parent=35 // pred_region
          %276 = dma.done %s269, 8192
        $region44: #{_qwen2_mlp_core.1} parent=35 // pred_fallthru
          _
        %s277 = sand.u32 %s22, 1
        %s278 = scalar_lea.sflag [#allocation6], %s277
        %s279 = sand.u32 %s120, 1
        %s280 = smul.addr %s279, 512
        %s281 = scalar_lea.vmem [#allocation7], %s280
        // Predicated region
        $region45: #{_qwen2_mlp_core.1} parent=35 // pred_check
          %p282 = pneg %p133
        $region46: #{_qwen2_mlp_core.1} parent=35 // pred_check_branch
          %284 = sbr.rel (%p282) target = $region48
        $region47: #{_qwen2_mlp_core.1} parent=35 // pred_region
          %285 = dma.done %s278, 8192
        $region48: #{_qwen2_mlp_core.1} parent=35 // pred_fallthru
          _
        %s286 = smul.u32 2, %s26
        %p287 = scmp.lt.s32.totalorder %s286, 1
        %s288 = scalar_select %p287, %s286, 1
        %s289 = smul.addr %s288, 2
        %s290 = smul.addr %s289, 4
        %s291 = scalar_lea.vmem %s0, %s290
        %p292 = pneg %p55
        %p293 = pneg %p52
        %s294 = sand.u32 %s68, 1
        %s295 = scalar_lea.sflag [#allocation3], %s294
        %s296 = sand.u32 %s68, 1
        %s297 = smul.addr %s296, 512
        %s298 = scalar_lea.vmem [#allocation2], %s297
        %p299 = pneg %p81
        %p300 = pneg %p78
        %s301 = sand.u32 %s22, 1
        %s302 = scalar_lea.sflag [#allocation6], %s301
        %s303 = sand.u32 %s94, 1
        %s304 = smul.addr %s303, 512
        %s305 = scalar_lea.vmem [#allocation5], %s304
        %p306 = pneg %p107
        %p307 = pneg %p104
        %s308 = sand.u32 %s22, 1
        %s309 = scalar_lea.sflag [#allocation6], %s308
        %s310 = sand.u32 %s120, 1
        %s311 = smul.addr %s310, 512
        %s312 = scalar_lea.vmem [#allocation7], %s311
        %p313 = pneg %p133
        %p314 = pneg %p130
        %p315 = pneg %p159
        %p316 = pneg %p156
        %s317 = smul.u32 2, %s26
        %p318 = scmp.lt.s32.totalorder %s317, 1
        %s319 = scalar_select %p318, %s317, 1
        %s320 = smul.addr %s319, 2
        %s321 = smul.addr %s320, 4
        %s322 = scalar_lea.vmem %s0, %s321
        %s323 = smul.u32 2, %s26
        %s324 = smul.u32 4, %s27
        %s325 = smul.u32 4, %s27
        %s326 = smul.u32 64, %s27
        %s327 = smul.u32 2, %s26
        %p328 = scmp.eq.s32.totalorder %s27, 0
        // Predicated region
        $region49: #{_qwen2_mlp_core.1} parent=35 // pred_check
          %p329 = pneg %p328
        $region50: #{_qwen2_mlp_core.1} parent=35 // pred_check_branch
          %331 = sbr.rel (%p329) target = $region52
        $region51: #{_qwen2_mlp_core.1} parent=35 // pred_region
          %332 = vst [vmem:[#allocation8] sm:$0xff] 0.0
          %333 = vst [vmem:[#allocation8 + $0x8] sm:$0xff] 0.0
          %334 = vst [vmem:[#allocation8 + $0x10] sm:$0xff] 0.0
          %335 = vst [vmem:[#allocation8 + $0x18] sm:$0xff] 0.0
        $region52: #{_qwen2_mlp_core.1} parent=35 // pred_fallthru
          _
        %v336 = vld [vmem:[%s322] sm:$0xff]
        %v337 = vld [vmem:[%s322 + $0x8] sm:$0xff]
        %v338 = vld [vmem:[%s263] sm:$0xff]
        %v339 = vld [vmem:[%s263 + $0x10] sm:$0xff]
        %v340 = vld [vmem:[%s263 + $0x20] sm:$0xff]
        %v341 = vld [vmem:[%s263 + $0x30] sm:$0xff]
        %v342 = vld [vmem:[%s263 + $0x40] sm:$0xff]
        %v343 = vld [vmem:[%s263 + $0x50] sm:$0xff]
        %v344 = vld [vmem:[%s263 + $0x60] sm:$0xff]
        %v345 = vld [vmem:[%s263 + $0x70] sm:$0xff]
        %v346 = vld [vmem:[%s263 + $0x80] sm:$0xff]
        %v347 = vld [vmem:[%s263 + $0x90] sm:$0xff]
        %v348 = vld [vmem:[%s263 + $0xa0] sm:$0xff]
        %v349 = vld [vmem:[%s263 + $0xb0] sm:$0xff]
        %v350 = vld [vmem:[%s263 + $0xc0] sm:$0xff]
        %v351 = vld [vmem:[%s263 + $0xd0] sm:$0xff]
        %v352 = vld [vmem:[%s263 + $0xe0] sm:$0xff]
        %v353 = vld [vmem:[%s263 + $0xf0] sm:$0xff]
        %v354 = vld [vmem:[%s263 + $0x100] sm:$0xff]
        %v355 = vld [vmem:[%s263 + $0x110] sm:$0xff]
        %v356 = vld [vmem:[%s263 + $0x120] sm:$0xff]
        %v357 = vld [vmem:[%s263 + $0x130] sm:$0xff]
        %v358 = vld [vmem:[%s263 + $0x140] sm:$0xff]
        %v359 = vld [vmem:[%s263 + $0x150] sm:$0xff]
        %v360 = vld [vmem:[%s263 + $0x160] sm:$0xff]
        %v361 = vld [vmem:[%s263 + $0x170] sm:$0xff]
        %v362 = vld [vmem:[%s263 + $0x180] sm:$0xff]
        %v363 = vld [vmem:[%s263 + $0x190] sm:$0xff]
        %v364 = vld [vmem:[%s263 + $0x1a0] sm:$0xff]
        %v365 = vld [vmem:[%s263 + $0x1b0] sm:$0xff]
        %v366 = vld [vmem:[%s263 + $0x1c0] sm:$0xff]
        %v367 = vld [vmem:[%s263 + $0x1d0] sm:$0xff]
        %v368 = vld [vmem:[%s263 + $0x1e0] sm:$0xff]
        %v369 = vld [vmem:[%s263 + $0x1f0] sm:$0xff]
        %v372 = vunpack.c.l.b16 %v336
        %v373 = vunpack.c.h.b16 %v336
        %v374 = vunpack.c.l.b16 %v337
        %v375 = vunpack.c.h.b16 %v337
        %v376 = vpack.c.b16 %v374, %v372
        %v377 = vpack.c.b16 %v375, %v373
        %v412 = vunpack.c.l.b16 %v338
        %v413 = vunpack.c.h.b16 %v338
        %v414 = vunpack.c.l.b16 %v339
        %v415 = vunpack.c.h.b16 %v339
        %v416 = vunpack.c.l.b16 %v340
        %v417 = vunpack.c.h.b16 %v340
        %v418 = vunpack.c.l.b16 %v341
        %v419 = vunpack.c.h.b16 %v341
        %v420 = vunpack.c.l.b16 %v342
        %v421 = vunpack.c.h.b16 %v342
        %v422 = vunpack.c.l.b16 %v343
        %v423 = vunpack.c.h.b16 %v343
        %v424 = vunpack.c.l.b16 %v344
        %v425 = vunpack.c.h.b16 %v344
        %v426 = vunpack.c.l.b16 %v345
        %v427 = vunpack.c.h.b16 %v345
        %v428 = vunpack.c.l.b16 %v346
        %v429 = vunpack.c.h.b16 %v346
        %v430 = vunpack.c.l.b16 %v347
        %v431 = vunpack.c.h.b16 %v347
        %v432 = vunpack.c.l.b16 %v348
        %v433 = vunpack.c.h.b16 %v348
        %v434 = vunpack.c.l.b16 %v349
        %v435 = vunpack.c.h.b16 %v349
        %v436 = vunpack.c.l.b16 %v350
        %v437 = vunpack.c.h.b16 %v350
        %v438 = vunpack.c.l.b16 %v351
        %v439 = vunpack.c.h.b16 %v351
        %v440 = vunpack.c.l.b16 %v352
        %v441 = vunpack.c.h.b16 %v352
        %v442 = vunpack.c.l.b16 %v353
        %v443 = vunpack.c.h.b16 %v353
        %v444 = vunpack.c.l.b16 %v354
        %v445 = vunpack.c.h.b16 %v354
        %v446 = vunpack.c.l.b16 %v355
        %v447 = vunpack.c.h.b16 %v355
        %v448 = vunpack.c.l.b16 %v356
        %v449 = vunpack.c.h.b16 %v356
        %v450 = vunpack.c.l.b16 %v357
        %v451 = vunpack.c.h.b16 %v357
        %v452 = vunpack.c.l.b16 %v358
        %v453 = vunpack.c.h.b16 %v358
        %v454 = vunpack.c.l.b16 %v359
        %v455 = vunpack.c.h.b16 %v359
        %v456 = vunpack.c.l.b16 %v360
        %v457 = vunpack.c.h.b16 %v360
        %v458 = vunpack.c.l.b16 %v361
        %v459 = vunpack.c.h.b16 %v361
        %v460 = vunpack.c.l.b16 %v362
        %v461 = vunpack.c.h.b16 %v362
        %v462 = vunpack.c.l.b16 %v363
        %v463 = vunpack.c.h.b16 %v363
        %v464 = vunpack.c.l.b16 %v364
        %v465 = vunpack.c.h.b16 %v364
        %v466 = vunpack.c.l.b16 %v365
        %v467 = vunpack.c.h.b16 %v365
        %v468 = vunpack.c.l.b16 %v366
        %v469 = vunpack.c.h.b16 %v366
        %v470 = vunpack.c.l.b16 %v367
        %v471 = vunpack.c.h.b16 %v367
        %v472 = vunpack.c.l.b16 %v368
        %v473 = vunpack.c.h.b16 %v368
        %v474 = vunpack.c.l.b16 %v369
        %v475 = vunpack.c.h.b16 %v369
        %v476 = vpack.c.b16 %v414, %v412
        %v477 = vpack.c.b16 %v415, %v413
        %v478 = vpack.c.b16 %v418, %v416
        %v479 = vpack.c.b16 %v419, %v417
        %v480 = vpack.c.b16 %v422, %v420
        %v481 = vpack.c.b16 %v423, %v421
        %v482 = vpack.c.b16 %v426, %v424
        %v483 = vpack.c.b16 %v427, %v425
        %v484 = vpack.c.b16 %v430, %v428
        %v485 = vpack.c.b16 %v431, %v429
        %v486 = vpack.c.b16 %v434, %v432
        %v487 = vpack.c.b16 %v435, %v433
        %v488 = vpack.c.b16 %v438, %v436
        %v489 = vpack.c.b16 %v439, %v437
        %v490 = vpack.c.b16 %v442, %v440
        %v491 = vpack.c.b16 %v443, %v441
        %v492 = vpack.c.b16 %v446, %v444
        %v493 = vpack.c.b16 %v447, %v445
        %v494 = vpack.c.b16 %v450, %v448
        %v495 = vpack.c.b16 %v451, %v449
        %v496 = vpack.c.b16 %v454, %v452
        %v497 = vpack.c.b16 %v455, %v453
        %v498 = vpack.c.b16 %v458, %v456
        %v499 = vpack.c.b16 %v459, %v457
        %v500 = vpack.c.b16 %v462, %v460
        %v501 = vpack.c.b16 %v463, %v461
        %v502 = vpack.c.b16 %v466, %v464
        %v503 = vpack.c.b16 %v467, %v465
        %v504 = vpack.c.b16 %v470, %v468
        %v505 = vpack.c.b16 %v471, %v469
        %v506 = vpack.c.b16 %v474, %v472
        %v507 = vpack.c.b16 %v475, %v473
        %540 = vmatprep.subr.bf16.mxu0 %v477
        %541 = vmatpush1.bf16.msra.mxu0 %v476
        %542 = vmatprep.subr.bf16.mxu0 %v479
        %543 = vmatpush1.bf16.msra.mxu0 %v478
        %544 = vmatprep.subr.bf16.mxu0 %v481
        %545 = vmatpush1.bf16.msra.mxu0 %v480
        %546 = vmatprep.subr.bf16.mxu0 %v483
        %547 = vmatpush1.bf16.msra.mxu0 %v482
        %548 = vmatprep.subr.bf16.mxu0 %v485
        %549 = vmatpush1.bf16.msra.mxu0 %v484
        %550 = vmatprep.subr.bf16.mxu0 %v487
        %551 = vmatpush1.bf16.msra.mxu0 %v486
        %552 = vmatprep.subr.bf16.mxu0 %v489
        %553 = vmatpush1.bf16.msra.mxu0 %v488
        %554 = vmatprep.subr.bf16.mxu0 %v491
        %555 = vmatpush1.bf16.msra.mxu0 %v490
        %556 = vmatprep.subr.bf16.mxu0 %v493
        %557 = vmatpush1.bf16.msra.mxu0 %v492
        %558 = vmatprep.subr.bf16.mxu0 %v495
        %559 = vmatpush1.bf16.msra.mxu0 %v494
        %560 = vmatprep.subr.bf16.mxu0 %v497
        %561 = vmatpush1.bf16.msra.mxu0 %v496
        %562 = vmatprep.subr.bf16.mxu0 %v499
        %563 = vmatpush1.bf16.msra.mxu0 %v498
        %564 = vmatprep.subr.bf16.mxu0 %v501
        %565 = vmatpush1.bf16.msra.mxu0 %v500
        %566 = vmatprep.subr.bf16.mxu0 %v503
        %567 = vmatpush1.bf16.msra.mxu0 %v502
        %568 = vmatprep.subr.bf16.mxu0 %v505
        %569 = vmatpush1.bf16.msra.mxu0 %v504
        %570 = vmatprep.subr.bf16.mxu0 %v507
        %571 = vmatpush1.bf16.msra.mxu0 %v506
        %572 = vmatprep.mubr.bf16.mxu0 %v377
        %573 = vmatmul.mubr.bf16.gmra.mrb[0].mxu0 %v376
        %v574 = vpop.f32.mrb[0].mxu0
        %v575 = vadd.f32 0.0, %v574
        %v576 = vpop.f32.mrb[0].mxu0
        %v577 = vadd.f32 0.0, %v576
        %v578 = vpop.f32.mrb[0].mxu0
        %v579 = vadd.f32 0.0, %v578
        %v580 = vpop.f32.mrb[0].mxu0
        %v581 = vadd.f32 0.0, %v580
        %582 = vdwg.mxu0
        %v583 = vld [vmem:[%s272] sm:$0xff]
        %v584 = vld [vmem:[%s272 + $0x10] sm:$0xff]
        %v585 = vld [vmem:[%s272 + $0x20] sm:$0xff]
        %v586 = vld [vmem:[%s272 + $0x30] sm:$0xff]
        %v587 = vld [vmem:[%s272 + $0x40] sm:$0xff]
        %v588 = vld [vmem:[%s272 + $0x50] sm:$0xff]
        %v589 = vld [vmem:[%s272 + $0x60] sm:$0xff]
        %v590 = vld [vmem:[%s272 + $0x70] sm:$0xff]
        %v591 = vld [vmem:[%s272 + $0x80] sm:$0xff]
        %v592 = vld [vmem:[%s272 + $0x90] sm:$0xff]
        %v593 = vld [vmem:[%s272 + $0xa0] sm:$0xff]
        %v594 = vld [vmem:[%s272 + $0xb0] sm:$0xff]
        %v595 = vld [vmem:[%s272 + $0xc0] sm:$0xff]
        %v596 = vld [vmem:[%s272 + $0xd0] sm:$0xff]
        %v597 = vld [vmem:[%s272 + $0xe0] sm:$0xff]
        %v598 = vld [vmem:[%s272 + $0xf0] sm:$0xff]
        %v599 = vld [vmem:[%s272 + $0x100] sm:$0xff]
        %v600 = vld [vmem:[%s272 + $0x110] sm:$0xff]
        %v601 = vld [vmem:[%s272 + $0x120] sm:$0xff]
        %v602 = vld [vmem:[%s272 + $0x130] sm:$0xff]
        %v603 = vld [vmem:[%s272 + $0x140] sm:$0xff]
        %v604 = vld [vmem:[%s272 + $0x150] sm:$0xff]
        %v605 = vld [vmem:[%s272 + $0x160] sm:$0xff]
        %v606 = vld [vmem:[%s272 + $0x170] sm:$0xff]
        %v607 = vld [vmem:[%s272 + $0x180] sm:$0xff]
        %v608 = vld [vmem:[%s272 + $0x190] sm:$0xff]
        %v609 = vld [vmem:[%s272 + $0x1a0] sm:$0xff]
        %v610 = vld [vmem:[%s272 + $0x1b0] sm:$0xff]
        %v611 = vld [vmem:[%s272 + $0x1c0] sm:$0xff]
        %v612 = vld [vmem:[%s272 + $0x1d0] sm:$0xff]
        %v613 = vld [vmem:[%s272 + $0x1e0] sm:$0xff]
        %v614 = vld [vmem:[%s272 + $0x1f0] sm:$0xff]
        %v647 = vunpack.c.l.b16 %v583
        %v648 = vunpack.c.h.b16 %v583
        %v649 = vunpack.c.l.b16 %v584
        %v650 = vunpack.c.h.b16 %v584
        %v651 = vunpack.c.l.b16 %v585
        %v652 = vunpack.c.h.b16 %v585
        %v653 = vunpack.c.l.b16 %v586
        %v654 = vunpack.c.h.b16 %v586
        %v655 = vunpack.c.l.b16 %v587
        %v656 = vunpack.c.h.b16 %v587
        %v657 = vunpack.c.l.b16 %v588
        %v658 = vunpack.c.h.b16 %v588
        %v659 = vunpack.c.l.b16 %v589
        %v660 = vunpack.c.h.b16 %v589
        %v661 = vunpack.c.l.b16 %v590
        %v662 = vunpack.c.h.b16 %v590
        %v663 = vunpack.c.l.b16 %v591
        %v664 = vunpack.c.h.b16 %v591
        %v665 = vunpack.c.l.b16 %v592
        %v666 = vunpack.c.h.b16 %v592
        %v667 = vunpack.c.l.b16 %v593
        %v668 = vunpack.c.h.b16 %v593
        %v669 = vunpack.c.l.b16 %v594
        %v670 = vunpack.c.h.b16 %v594
        %v671 = vunpack.c.l.b16 %v595
        %v672 = vunpack.c.h.b16 %v595
        %v673 = vunpack.c.l.b16 %v596
        %v674 = vunpack.c.h.b16 %v596
        %v675 = vunpack.c.l.b16 %v597
        %v676 = vunpack.c.h.b16 %v597
        %v677 = vunpack.c.l.b16 %v598
        %v678 = vunpack.c.h.b16 %v598
        %v679 = vunpack.c.l.b16 %v599
        %v680 = vunpack.c.h.b16 %v599
        %v681 = vunpack.c.l.b16 %v600
        %v682 = vunpack.c.h.b16 %v600
        %v683 = vunpack.c.l.b16 %v601
        %v684 = vunpack.c.h.b16 %v601
        %v685 = vunpack.c.l.b16 %v602
        %v686 = vunpack.c.h.b16 %v602
        %v687 = vunpack.c.l.b16 %v603
        %v688 = vunpack.c.h.b16 %v603
        %v689 = vunpack.c.l.b16 %v604
        %v690 = vunpack.c.h.b16 %v604
        %v691 = vunpack.c.l.b16 %v605
        %v692 = vunpack.c.h.b16 %v605
        %v693 = vunpack.c.l.b16 %v606
        %v694 = vunpack.c.h.b16 %v606
        %v695 = vunpack.c.l.b16 %v607
        %v696 = vunpack.c.h.b16 %v607
        %v697 = vunpack.c.l.b16 %v608
        %v698 = vunpack.c.h.b16 %v608
        %v699 = vunpack.c.l.b16 %v609
        %v700 = vunpack.c.h.b16 %v609
        %v701 = vunpack.c.l.b16 %v610
        %v702 = vunpack.c.h.b16 %v610
        %v703 = vunpack.c.l.b16 %v611
        %v704 = vunpack.c.h.b16 %v611
        %v705 = vunpack.c.l.b16 %v612
        %v706 = vunpack.c.h.b16 %v612
        %v707 = vunpack.c.l.b16 %v613
        %v708 = vunpack.c.h.b16 %v613
        %v709 = vunpack.c.l.b16 %v614
        %v710 = vunpack.c.h.b16 %v614
        %v711 = vpack.c.b16 %v649, %v647
        %v712 = vpack.c.b16 %v650, %v648
        %v713 = vpack.c.b16 %v653, %v651
        %v714 = vpack.c.b16 %v654, %v652
        %v715 = vpack.c.b16 %v657, %v655
        %v716 = vpack.c.b16 %v658, %v656
        %v717 = vpack.c.b16 %v661, %v659
        %v718 = vpack.c.b16 %v662, %v660
        %v719 = vpack.c.b16 %v665, %v663
        %v720 = vpack.c.b16 %v666, %v664
        %v721 = vpack.c.b16 %v669, %v667
        %v722 = vpack.c.b16 %v670, %v668
        %v723 = vpack.c.b16 %v673, %v671
        %v724 = vpack.c.b16 %v674, %v672
        %v725 = vpack.c.b16 %v677, %v675
        %v726 = vpack.c.b16 %v678, %v676
        %v727 = vpack.c.b16 %v681, %v679
        %v728 = vpack.c.b16 %v682, %v680
        %v729 = vpack.c.b16 %v685, %v683
        %v730 = vpack.c.b16 %v686, %v684
        %v731 = vpack.c.b16 %v689, %v687
        %v732 = vpack.c.b16 %v690, %v688
        %v733 = vpack.c.b16 %v693, %v691
        %v734 = vpack.c.b16 %v694, %v692
        %v735 = vpack.c.b16 %v697, %v695
        %v736 = vpack.c.b16 %v698, %v696
        %v737 = vpack.c.b16 %v701, %v699
        %v738 = vpack.c.b16 %v702, %v700
        %v739 = vpack.c.b16 %v705, %v703
        %v740 = vpack.c.b16 %v706, %v704
        %v741 = vpack.c.b16 %v709, %v707
        %v742 = vpack.c.b16 %v710, %v708
        %775 = vmatprep.subr.bf16.mxu0 %v712
        %776 = vmatpush1.bf16.msra.mxu0 %v711
        %777 = vmatprep.subr.bf16.mxu0 %v714
        %778 = vmatpush1.bf16.msra.mxu0 %v713
        %779 = vmatprep.subr.bf16.mxu0 %v716
        %780 = vmatpush1.bf16.msra.mxu0 %v715
        %781 = vmatprep.subr.bf16.mxu0 %v718
        %782 = vmatpush1.bf16.msra.mxu0 %v717
        %783 = vmatprep.subr.bf16.mxu0 %v720
        %784 = vmatpush1.bf16.msra.mxu0 %v719
        %785 = vmatprep.subr.bf16.mxu0 %v722
        %786 = vmatpush1.bf16.msra.mxu0 %v721
        %787 = vmatprep.subr.bf16.mxu0 %v724
        %788 = vmatpush1.bf16.msra.mxu0 %v723
        %789 = vmatprep.subr.bf16.mxu0 %v726
        %790 = vmatpush1.bf16.msra.mxu0 %v725
        %791 = vmatprep.subr.bf16.mxu0 %v728
        %792 = vmatpush1.bf16.msra.mxu0 %v727
        %793 = vmatprep.subr.bf16.mxu0 %v730
        %794 = vmatpush1.bf16.msra.mxu0 %v729
        %795 = vmatprep.subr.bf16.mxu0 %v732
        %796 = vmatpush1.bf16.msra.mxu0 %v731
        %797 = vmatprep.subr.bf16.mxu0 %v734
        %798 = vmatpush1.bf16.msra.mxu0 %v733
        %799 = vmatprep.subr.bf16.mxu0 %v736
        %800 = vmatpush1.bf16.msra.mxu0 %v735
        %801 = vmatprep.subr.bf16.mxu0 %v738
        %802 = vmatpush1.bf16.msra.mxu0 %v737
        %803 = vmatprep.subr.bf16.mxu0 %v740
        %804 = vmatpush1.bf16.msra.mxu0 %v739
        %805 = vmatprep.subr.bf16.mxu0 %v742
        %806 = vmatpush1.bf16.msra.mxu0 %v741
        %807 = vmatprep.mubr.bf16.mxu0 %v377
        %808 = vmatmul.mubr.bf16.gmra.mrb[0].mxu0 %v376
        %v809 = vpop.f32.mrb[0].mxu0
        %v810 = vadd.f32 0.0, %v809
        %v811 = vpop.f32.mrb[0].mxu0
        %v812 = vadd.f32 0.0, %v811
        %v813 = vpop.f32.mrb[0].mxu0
        %v814 = vadd.f32 0.0, %v813
        %v815 = vpop.f32.mrb[0].mxu0
        %v816 = vadd.f32 0.0, %v815
        %817 = vdwg.mxu0
        %v818 = vxor.u32 %v575, 2147483648
        %v819 = vxor.u32 %v577, 2147483648
        %v820 = vxor.u32 %v579, 2147483648
        %v821 = vxor.u32 %v581, 2147483648
        %v822 = vmul.f32 %v818, 1.442695
        %v823 = vpow.pop %v822
        %v824 = vmul.f32 %v819, 1.442695
        %v825 = vpow.pop %v824
        %v826 = vmul.f32 %v820, 1.442695
        %v827 = vpow.pop %v826
        %v828 = vmul.f32 %v821, 1.442695
        %v829 = vpow.pop %v828
        %v830 = vadd.f32 %v823, 1.0
        %v831 = vadd.f32 %v825, 1.0
        %v832 = vadd.f32 %v827, 1.0
        %v833 = vadd.f32 %v829, 1.0
        %v834 = vrcp.pop %v830
        %v835 = vmul.f32 1.0, %v834
        %v836 = vrcp.pop %v831
        %v837 = vmul.f32 1.0, %v836
        %v838 = vrcp.pop %v832
        %v839 = vmul.f32 1.0, %v838
        %v840 = vrcp.pop %v833
        %v841 = vmul.f32 1.0, %v840
        %v842 = vmul.f32 %v575, %v835
        %v843 = vmul.f32 %v577, %v837
        %v844 = vmul.f32 %v579, %v839
        %v845 = vmul.f32 %v581, %v841
        %v846 = vmul.f32 %v842, %v810
        %v847 = vmul.f32 %v843, %v812
        %v848 = vmul.f32 %v844, %v814
        %v849 = vmul.f32 %v845, %v816
        %v850 = vpack.c.bf16 %v848, %v846
        %v851 = vpack.c.bf16 %v849, %v847
        %v852 = vld [vmem:[#allocation8] sm:$0xff]
        %v853 = vld [vmem:[#allocation8 + $0x8] sm:$0xff]
        %v854 = vld [vmem:[#allocation8 + $0x10] sm:$0xff]
        %v855 = vld [vmem:[#allocation8 + $0x18] sm:$0xff]
        %v856 = vld [vmem:[%s281] sm:$0xff]
        %v857 = vld [vmem:[%s281 + $0x8] sm:$0xff]
        %v858 = vld [vmem:[%s281 + $0x10] sm:$0xff]
        %v859 = vld [vmem:[%s281 + $0x18] sm:$0xff]
        %v860 = vld [vmem:[%s281 + $0x20] sm:$0xff]
        %v861 = vld [vmem:[%s281 + $0x28] sm:$0xff]
        %v862 = vld [vmem:[%s281 + $0x30] sm:$0xff]
        %v863 = vld [vmem:[%s281 + $0x38] sm:$0xff]
        %v864 = vld [vmem:[%s281 + $0x40] sm:$0xff]
        %v865 = vld [vmem:[%s281 + $0x48] sm:$0xff]
        %v866 = vld [vmem:[%s281 + $0x50] sm:$0xff]
        %v867 = vld [vmem:[%s281 + $0x58] sm:$0xff]
        %v868 = vld [vmem:[%s281 + $0x60] sm:$0xff]
        %v869 = vld [vmem:[%s281 + $0x68] sm:$0xff]
        %v870 = vld [vmem:[%s281 + $0x70] sm:$0xff]
        %v871 = vld [vmem:[%s281 + $0x78] sm:$0xff]
        %v872 = vld [vmem:[%s281 + $0x80] sm:$0xff]
        %v873 = vld [vmem:[%s281 + $0x88] sm:$0xff]
        %v874 = vld [vmem:[%s281 + $0x90] sm:$0xff]
        %v875 = vld [vmem:[%s281 + $0x98] sm:$0xff]
        %v876 = vld [vmem:[%s281 + $0xa0] sm:$0xff]
        %v877 = vld [vmem:[%s281 + $0xa8] sm:$0xff]
        %v878 = vld [vmem:[%s281 + $0xb0] sm:$0xff]
        %v879 = vld [vmem:[%s281 + $0xb8] sm:$0xff]
        %v880 = vld [vmem:[%s281 + $0xc0] sm:$0xff]
        %v881 = vld [vmem:[%s281 + $0xc8] sm:$0xff]
        %v882 = vld [vmem:[%s281 + $0xd0] sm:$0xff]
        %v883 = vld [vmem:[%s281 + $0xd8] sm:$0xff]
        %v884 = vld [vmem:[%s281 + $0xe0] sm:$0xff]
        %v885 = vld [vmem:[%s281 + $0xe8] sm:$0xff]
        %v886 = vld [vmem:[%s281 + $0xf0] sm:$0xff]
        %v887 = vld [vmem:[%s281 + $0xf8] sm:$0xff]
        %v920 = vunpack.c.l.b16 %v856
        %v921 = vunpack.c.h.b16 %v856
        %v922 = vunpack.c.l.b16 %v857
        %v923 = vunpack.c.h.b16 %v857
        %v924 = vunpack.c.l.b16 %v858
        %v925 = vunpack.c.h.b16 %v858
        %v926 = vunpack.c.l.b16 %v859
        %v927 = vunpack.c.h.b16 %v859
        %v928 = vunpack.c.l.b16 %v860
        %v929 = vunpack.c.h.b16 %v860
        %v930 = vunpack.c.l.b16 %v861
        %v931 = vunpack.c.h.b16 %v861
        %v932 = vunpack.c.l.b16 %v862
        %v933 = vunpack.c.h.b16 %v862
        %v934 = vunpack.c.l.b16 %v863
        %v935 = vunpack.c.h.b16 %v863
        %v936 = vunpack.c.l.b16 %v864
        %v937 = vunpack.c.h.b16 %v864
        %v938 = vunpack.c.l.b16 %v865
        %v939 = vunpack.c.h.b16 %v865
        %v940 = vunpack.c.l.b16 %v866
        %v941 = vunpack.c.h.b16 %v866
        %v942 = vunpack.c.l.b16 %v867
        %v943 = vunpack.c.h.b16 %v867
        %v944 = vunpack.c.l.b16 %v868
        %v945 = vunpack.c.h.b16 %v868
        %v946 = vunpack.c.l.b16 %v869
        %v947 = vunpack.c.h.b16 %v869
        %v948 = vunpack.c.l.b16 %v870
        %v949 = vunpack.c.h.b16 %v870
        %v950 = vunpack.c.l.b16 %v871
        %v951 = vunpack.c.h.b16 %v871
        %v952 = vunpack.c.l.b16 %v872
        %v953 = vunpack.c.h.b16 %v872
        %v954 = vunpack.c.l.b16 %v873
        %v955 = vunpack.c.h.b16 %v873
        %v956 = vunpack.c.l.b16 %v874
        %v957 = vunpack.c.h.b16 %v874
        %v958 = vunpack.c.l.b16 %v875
        %v959 = vunpack.c.h.b16 %v875
        %v960 = vunpack.c.l.b16 %v876
        %v961 = vunpack.c.h.b16 %v876
        %v962 = vunpack.c.l.b16 %v877
        %v963 = vunpack.c.h.b16 %v877
        %v964 = vunpack.c.l.b16 %v878
        %v965 = vunpack.c.h.b16 %v878
        %v966 = vunpack.c.l.b16 %v879
        %v967 = vunpack.c.h.b16 %v879
        %v968 = vunpack.c.l.b16 %v880
        %v969 = vunpack.c.h.b16 %v880
        %v970 = vunpack.c.l.b16 %v881
        %v971 = vunpack.c.h.b16 %v881
        %v972 = vunpack.c.l.b16 %v882
        %v973 = vunpack.c.h.b16 %v882
        %v974 = vunpack.c.l.b16 %v883
        %v975 = vunpack.c.h.b16 %v883
        %v976 = vunpack.c.l.b16 %v884
        %v977 = vunpack.c.h.b16 %v884
        %v978 = vunpack.c.l.b16 %v885
        %v979 = vunpack.c.h.b16 %v885
        %v980 = vunpack.c.l.b16 %v886
        %v981 = vunpack.c.h.b16 %v886
        %v982 = vunpack.c.l.b16 %v887
        %v983 = vunpack.c.h.b16 %v887
        %v984 = vpack.c.b16 %v922, %v920
        %v985 = vpack.c.b16 %v923, %v921
        %v986 = vpack.c.b16 %v926, %v924
        %v987 = vpack.c.b16 %v927, %v925
        %v988 = vpack.c.b16 %v930, %v928
        %v989 = vpack.c.b16 %v931, %v929
        %v990 = vpack.c.b16 %v934, %v932
        %v991 = vpack.c.b16 %v935, %v933
        %v992 = vpack.c.b16 %v938, %v936
        %v993 = vpack.c.b16 %v939, %v937
        %v994 = vpack.c.b16 %v942, %v940
        %v995 = vpack.c.b16 %v943, %v941
        %v996 = vpack.c.b16 %v946, %v944
        %v997 = vpack.c.b16 %v947, %v945
        %v998 = vpack.c.b16 %v950, %v948
        %v999 = vpack.c.b16 %v951, %v949
        %v1000 = vpack.c.b16 %v954, %v952
        %v1001 = vpack.c.b16 %v955, %v953
        %v1002 = vpack.c.b16 %v958, %v956
        %v1003 = vpack.c.b16 %v959, %v957
        %v1004 = vpack.c.b16 %v962, %v960
        %v1005 = vpack.c.b16 %v963, %v961
        %v1006 = vpack.c.b16 %v966, %v964
        %v1007 = vpack.c.b16 %v967, %v965
        %v1008 = vpack.c.b16 %v970, %v968
        %v1009 = vpack.c.b16 %v971, %v969
        %v1010 = vpack.c.b16 %v974, %v972
        %v1011 = vpack.c.b16 %v975, %v973
        %v1012 = vpack.c.b16 %v978, %v976
        %v1013 = vpack.c.b16 %v979, %v977
        %v1014 = vpack.c.b16 %v982, %v980
        %v1015 = vpack.c.b16 %v983, %v981
        %1048 = vmatprep.subr.bf16.mxu0 %v985
        %1049 = vmatpush1.bf16.msra.mxu0 %v984
        %1050 = vmatprep.subr.bf16.mxu0 %v987
        %1051 = vmatpush1.bf16.msra.mxu0 %v986
        %1052 = vmatprep.subr.bf16.mxu0 %v989
        %1053 = vmatpush1.bf16.msra.mxu0 %v988
        %1054 = vmatprep.subr.bf16.mxu0 %v991
        %1055 = vmatpush1.bf16.msra.mxu0 %v990
        %1056 = vmatprep.subr.bf16.mxu0 %v993
        %1057 = vmatpush1.bf16.msra.mxu0 %v992
        %1058 = vmatprep.subr.bf16.mxu0 %v995
        %1059 = vmatpush1.bf16.msra.mxu0 %v994
        %1060 = vmatprep.subr.bf16.mxu0 %v997
        %1061 = vmatpush1.bf16.msra.mxu0 %v996
        %1062 = vmatprep.subr.bf16.mxu0 %v999
        %1063 = vmatpush1.bf16.msra.mxu0 %v998
        %1064 = vmatprep.subr.bf16.mxu0 %v1001
        %1065 = vmatpush1.bf16.msra.mxu0 %v1000
        %1066 = vmatprep.subr.bf16.mxu0 %v1003
        %1067 = vmatpush1.bf16.msra.mxu0 %v1002
        %1068 = vmatprep.subr.bf16.mxu0 %v1005
        %1069 = vmatpush1.bf16.msra.mxu0 %v1004
        %1070 = vmatprep.subr.bf16.mxu0 %v1007
        %1071 = vmatpush1.bf16.msra.mxu0 %v1006
        %1072 = vmatprep.subr.bf16.mxu0 %v1009
        %1073 = vmatpush1.bf16.msra.mxu0 %v1008
        %1074 = vmatprep.subr.bf16.mxu0 %v1011
        %1075 = vmatpush1.bf16.msra.mxu0 %v1010
        %1076 = vmatprep.subr.bf16.mxu0 %v1013
        %1077 = vmatpush1.bf16.msra.mxu0 %v1012
        %1078 = vmatprep.subr.bf16.mxu0 %v1015
        %1079 = vmatpush1.bf16.msra.mxu0 %v1014
        %1080 = vmatprep.mubr.bf16.mxu0 %v851
        %1081 = vmatmul.mubr.bf16.gmra.mrb[0].mxu0 %v850
        %v1082 = vpop.f32.mrb[0].mxu0
        %v1083 = vadd.f32 0.0, %v1082
        %v1084 = vpop.f32.mrb[0].mxu0
        %v1085 = vadd.f32 0.0, %v1084
        %v1086 = vpop.f32.mrb[0].mxu0
        %v1087 = vadd.f32 0.0, %v1086
        %v1088 = vpop.f32.mrb[0].mxu0
        %v1089 = vadd.f32 0.0, %v1088
        %1090 = vdwg.mxu0
        %v1091 = vadd.f32 %v852, %v1083
        %v1092 = vadd.f32 %v853, %v1085
        %v1093 = vadd.f32 %v854, %v1087
        %v1094 = vadd.f32 %v855, %v1089
        %1095 = vst [vmem:[#allocation8] sm:$0xff] %v1091
        %1096 = vst [vmem:[#allocation8 + $0x8] sm:$0xff] %v1092
        %1097 = vst [vmem:[#allocation8 + $0x10] sm:$0xff] %v1093
        %1098 = vst [vmem:[#allocation8 + $0x18] sm:$0xff] %v1094
        %v1099 = vld [vmem:[%s263 + $0x8] sm:$0xff]
        %v1100 = vld [vmem:[%s263 + $0x18] sm:$0xff]
        %v1101 = vld [vmem:[%s263 + $0x28] sm:$0xff]
        %v1102 = vld [vmem:[%s263 + $0x38] sm:$0xff]
        %v1103 = vld [vmem:[%s263 + $0x48] sm:$0xff]
        %v1104 = vld [vmem:[%s263 + $0x58] sm:$0xff]
        %v1105 = vld [vmem:[%s263 + $0x68] sm:$0xff]
        %v1106 = vld [vmem:[%s263 + $0x78] sm:$0xff]
        %v1107 = vld [vmem:[%s263 + $0x88] sm:$0xff]
        %v1108 = vld [vmem:[%s263 + $0x98] sm:$0xff]
        %v1109 = vld [vmem:[%s263 + $0xa8] sm:$0xff]
        %v1110 = vld [vmem:[%s263 + $0xb8] sm:$0xff]
        %v1111 = vld [vmem:[%s263 + $0xc8] sm:$0xff]
        %v1112 = vld [vmem:[%s263 + $0xd8] sm:$0xff]
        %v1113 = vld [vmem:[%s263 + $0xe8] sm:$0xff]
        %v1114 = vld [vmem:[%s263 + $0xf8] sm:$0xff]
        %v1115 = vld [vmem:[%s263 + $0x108] sm:$0xff]
        %v1116 = vld [vmem:[%s263 + $0x118] sm:$0xff]
        %v1117 = vld [vmem:[%s263 + $0x128] sm:$0xff]
        %v1118 = vld [vmem:[%s263 + $0x138] sm:$0xff]
        %v1119 = vld [vmem:[%s263 + $0x148] sm:$0xff]
        %v1120 = vld [vmem:[%s263 + $0x158] sm:$0xff]
        %v1121 = vld [vmem:[%s263 + $0x168] sm:$0xff]
        %v1122 = vld [vmem:[%s263 + $0x178] sm:$0xff]
        %v1123 = vld [vmem:[%s263 + $0x188] sm:$0xff]
        %v1124 = vld [vmem:[%s263 + $0x198] sm:$0xff]
        %v1125 = vld [vmem:[%s263 + $0x1a8] sm:$0xff]
        %v1126 = vld [vmem:[%s263 + $0x1b8] sm:$0xff]
        %v1127 = vld [vmem:[%s263 + $0x1c8] sm:$0xff]
        %v1128 = vld [vmem:[%s263 + $0x1d8] sm:$0xff]
        %v1129 = vld [vmem:[%s263 + $0x1e8] sm:$0xff]
        %v1130 = vld [vmem:[%s263 + $0x1f8] sm:$0xff]
        %v1163 = vunpack.c.l.b16 %v1099
        %v1164 = vunpack.c.h.b16 %v1099
        %v1165 = vunpack.c.l.b16 %v1100
        %v1166 = vunpack.c.h.b16 %v1100
        %v1167 = vunpack.c.l.b16 %v1101
        %v1168 = vunpack.c.h.b16 %v1101
        %v1169 = vunpack.c.l.b16 %v1102
        %v1170 = vunpack.c.h.b16 %v1102
        %v1171 = vunpack.c.l.b16 %v1103
        %v1172 = vunpack.c.h.b16 %v1103
        %v1173 = vunpack.c.l.b16 %v1104
        %v1174 = vunpack.c.h.b16 %v1104
        %v1175 = vunpack.c.l.b16 %v1105
        %v1176 = vunpack.c.h.b16 %v1105
        %v1177 = vunpack.c.l.b16 %v1106
        %v1178 = vunpack.c.h.b16 %v1106
        %v1179 = vunpack.c.l.b16 %v1107
        %v1180 = vunpack.c.h.b16 %v1107
        %v1181 = vunpack.c.l.b16 %v1108
        %v1182 = vunpack.c.h.b16 %v1108
        %v1183 = vunpack.c.l.b16 %v1109
        %v1184 = vunpack.c.h.b16 %v1109
        %v1185 = vunpack.c.l.b16 %v1110
        %v1186 = vunpack.c.h.b16 %v1110
        %v1187 = vunpack.c.l.b16 %v1111
        %v1188 = vunpack.c.h.b16 %v1111
        %v1189 = vunpack.c.l.b16 %v1112
        %v1190 = vunpack.c.h.b16 %v1112
        %v1191 = vunpack.c.l.b16 %v1113
        %v1192 = vunpack.c.h.b16 %v1113
        %v1193 = vunpack.c.l.b16 %v1114
        %v1194 = vunpack.c.h.b16 %v1114
        %v1195 = vunpack.c.l.b16 %v1115
        %v1196 = vunpack.c.h.b16 %v1115
        %v1197 = vunpack.c.l.b16 %v1116
        %v1198 = vunpack.c.h.b16 %v1116
        %v1199 = vunpack.c.l.b16 %v1117
        %v1200 = vunpack.c.h.b16 %v1117
        %v1201 = vunpack.c.l.b16 %v1118
        %v1202 = vunpack.c.h.b16 %v1118
        %v1203 = vunpack.c.l.b16 %v1119
        %v1204 = vunpack.c.h.b16 %v1119
        %v1205 = vunpack.c.l.b16 %v1120
        %v1206 = vunpack.c.h.b16 %v1120
        %v1207 = vunpack.c.l.b16 %v1121
        %v1208 = vunpack.c.h.b16 %v1121
        %v1209 = vunpack.c.l.b16 %v1122
        %v1210 = vunpack.c.h.b16 %v1122
        %v1211 = vunpack.c.l.b16 %v1123
        %v1212 = vunpack.c.h.b16 %v1123
        %v1213 = vunpack.c.l.b16 %v1124
        %v1214 = vunpack.c.h.b16 %v1124
        %v1215 = vunpack.c.l.b16 %v1125
        %v1216 = vunpack.c.h.b16 %v1125
        %v1217 = vunpack.c.l.b16 %v1126
        %v1218 = vunpack.c.h.b16 %v1126
        %v1219 = vunpack.c.l.b16 %v1127
        %v1220 = vunpack.c.h.b16 %v1127
        %v1221 = vunpack.c.l.b16 %v1128
        %v1222 = vunpack.c.h.b16 %v1128
        %v1223 = vunpack.c.l.b16 %v1129
        %v1224 = vunpack.c.h.b16 %v1129
        %v1225 = vunpack.c.l.b16 %v1130
        %v1226 = vunpack.c.h.b16 %v1130
        %v1227 = vpack.c.b16 %v1165, %v1163
        %v1228 = vpack.c.b16 %v1166, %v1164
        %v1229 = vpack.c.b16 %v1169, %v1167
        %v1230 = vpack.c.b16 %v1170, %v1168
        %v1231 = vpack.c.b16 %v1173, %v1171
        %v1232 = vpack.c.b16 %v1174, %v1172
        %v1233 = vpack.c.b16 %v1177, %v1175
        %v1234 = vpack.c.b16 %v1178, %v1176
        %v1235 = vpack.c.b16 %v1181, %v1179
        %v1236 = vpack.c.b16 %v1182, %v1180
        %v1237 = vpack.c.b16 %v1185, %v1183
        %v1238 = vpack.c.b16 %v1186, %v1184
        %v1239 = vpack.c.b16 %v1189, %v1187
        %v1240 = vpack.c.b16 %v1190, %v1188
        %v1241 = vpack.c.b16 %v1193, %v1191
        %v1242 = vpack.c.b16 %v1194, %v1192
        %v1243 = vpack.c.b16 %v1197, %v1195
        %v1244 = vpack.c.b16 %v1198, %v1196
        %v1245 = vpack.c.b16 %v1201, %v1199
        %v1246 = vpack.c.b16 %v1202, %v1200
        %v1247 = vpack.c.b16 %v1205, %v1203
        %v1248 = vpack.c.b16 %v1206, %v1204
        %v1249 = vpack.c.b16 %v1209, %v1207
        %v1250 = vpack.c.b16 %v1210, %v1208
        %v1251 = vpack.c.b16 %v1213, %v1211
        %v1252 = vpack.c.b16 %v1214, %v1212
        %v1253 = vpack.c.b16 %v1217, %v1215
        %v1254 = vpack.c.b16 %v1218, %v1216
        %v1255 = vpack.c.b16 %v1221, %v1219
        %v1256 = vpack.c.b16 %v1222, %v1220
        %v1257 = vpack.c.b16 %v1225, %v1223
        %v1258 = vpack.c.b16 %v1226, %v1224
        %1291 = vmatprep.subr.bf16.mxu0 %v1228
        %1292 = vmatpush1.bf16.msra.mxu0 %v1227
        %1293 = vmatprep.subr.bf16.mxu0 %v1230
        %1294 = vmatpush1.bf16.msra.mxu0 %v1229
        %1295 = vmatprep.subr.bf16.mxu0 %v1232
        %1296 = vmatpush1.bf16.msra.mxu0 %v1231
        %1297 = vmatprep.subr.bf16.mxu0 %v1234
        %1298 = vmatpush1.bf16.msra.mxu0 %v1233
        %1299 = vmatprep.subr.bf16.mxu0 %v1236
        %1300 = vmatpush1.bf16.msra.mxu0 %v1235
        %1301 = vmatprep.subr.bf16.mxu0 %v1238
        %1302 = vmatpush1.bf16.msra.mxu0 %v1237
        %1303 = vmatprep.subr.bf16.mxu0 %v1240
        %1304 = vmatpush1.bf16.msra.mxu0 %v1239
        %1305 = vmatprep.subr.bf16.mxu0 %v1242
        %1306 = vmatpush1.bf16.msra.mxu0 %v1241
        %1307 = vmatprep.subr.bf16.mxu0 %v1244
        %1308 = vmatpush1.bf16.msra.mxu0 %v1243
        %1309 = vmatprep.subr.bf16.mxu0 %v1246
        %1310 = vmatpush1.bf16.msra.mxu0 %v1245
        %1311 = vmatprep.subr.bf16.mxu0 %v1248
        %1312 = vmatpush1.bf16.msra.mxu0 %v1247
        %1313 = vmatprep.subr.bf16.mxu0 %v1250
        %1314 = vmatpush1.bf16.msra.mxu0 %v1249
        %1315 = vmatprep.subr.bf16.mxu0 %v1252
        %1316 = vmatpush1.bf16.msra.mxu0 %v1251
        %1317 = vmatprep.subr.bf16.mxu0 %v1254
        %1318 = vmatpush1.bf16.msra.mxu0 %v1253
        %1319 = vmatprep.subr.bf16.mxu0 %v1256
        %1320 = vmatpush1.bf16.msra.mxu0 %v1255
        %1321 = vmatprep.subr.bf16.mxu0 %v1258
        %1322 = vmatpush1.bf16.msra.mxu0 %v1257
        %1323 = vmatprep.mubr.bf16.mxu0 %v377
        %1324 = vmatmul.mubr.bf16.gmra.mrb[0].mxu0 %v376
        %v1325 = vpop.f32.mrb[0].mxu0
        %v1326 = vadd.f32 0.0, %v1325
        %v1327 = vpop.f32.mrb[0].mxu0
        %v1328 = vadd.f32 0.0, %v1327
        %v1329 = vpop.f32.mrb[0].mxu0
        %v1330 = vadd.f32 0.0, %v1329
        %v1331 = vpop.f32.mrb[0].mxu0
        %v1332 = vadd.f32 0.0, %v1331
        %1333 = vdwg.mxu0
        %v1334 = vld [vmem:[%s272 + $0x8] sm:$0xff]
        %v1335 = vld [vmem:[%s272 + $0x18] sm:$0xff]
        %v1336 = vld [vmem:[%s272 + $0x28] sm:$0xff]
        %v1337 = vld [vmem:[%s272 + $0x38] sm:$0xff]
        %v1338 = vld [vmem:[%s272 + $0x48] sm:$0xff]
        %v1339 = vld [vmem:[%s272 + $0x58] sm:$0xff]
        %v1340 = vld [vmem:[%s272 + $0x68] sm:$0xff]
        %v1341 = vld [vmem:[%s272 + $0x78] sm:$0xff]
        %v1342 = vld [vmem:[%s272 + $0x88] sm:$0xff]
        %v1343 = vld [vmem:[%s272 + $0x98] sm:$0xff]
        %v1344 = vld [vmem:[%s272 + $0xa8] sm:$0xff]
        %v1345 = vld [vmem:[%s272 + $0xb8] sm:$0xff]
        %v1346 = vld [vmem:[%s272 + $0xc8] sm:$0xff]
        %v1347 = vld [vmem:[%s272 + $0xd8] sm:$0xff]
        %v1348 = vld [vmem:[%s272 + $0xe8] sm:$0xff]
        %v1349 = vld [vmem:[%s272 + $0xf8] sm:$0xff]
        %v1350 = vld [vmem:[%s272 + $0x108] sm:$0xff]
        %v1351 = vld [vmem:[%s272 + $0x118] sm:$0xff]
        %v1352 = vld [vmem:[%s272 + $0x128] sm:$0xff]
        %v1353 = vld [vmem:[%s272 + $0x138] sm:$0xff]
        %v1354 = vld [vmem:[%s272 + $0x148] sm:$0xff]
        %v1355 = vld [vmem:[%s272 + $0x158] sm:$0xff]
        %v1356 = vld [vmem:[%s272 + $0x168] sm:$0xff]
        %v1357 = vld [vmem:[%s272 + $0x178] sm:$0xff]
        %v1358 = vld [vmem:[%s272 + $0x188] sm:$0xff]
        %v1359 = vld [vmem:[%s272 + $0x198] sm:$0xff]
        %v1360 = vld [vmem:[%s272 + $0x1a8] sm:$0xff]
        %v1361 = vld [vmem:[%s272 + $0x1b8] sm:$0xff]
        %v1362 = vld [vmem:[%s272 + $0x1c8] sm:$0xff]
        %v1363 = vld [vmem:[%s272 + $0x1d8] sm:$0xff]
        %v1364 = vld [vmem:[%s272 + $0x1e8] sm:$0xff]
        %v1365 = vld [vmem:[%s272 + $0x1f8] sm:$0xff]
        %v1398 = vunpack.c.l.b16 %v1334
        %v1399 = vunpack.c.h.b16 %v1334
        %v1400 = vunpack.c.l.b16 %v1335
        %v1401 = vunpack.c.h.b16 %v1335
        %v1402 = vunpack.c.l.b16 %v1336
        %v1403 = vunpack.c.h.b16 %v1336
        %v1404 = vunpack.c.l.b16 %v1337
        %v1405 = vunpack.c.h.b16 %v1337
        %v1406 = vunpack.c.l.b16 %v1338
        %v1407 = vunpack.c.h.b16 %v1338
        %v1408 = vunpack.c.l.b16 %v1339
        %v1409 = vunpack.c.h.b16 %v1339
        %v1410 = vunpack.c.l.b16 %v1340
        %v1411 = vunpack.c.h.b16 %v1340
        %v1412 = vunpack.c.l.b16 %v1341
        %v1413 = vunpack.c.h.b16 %v1341
        %v1414 = vunpack.c.l.b16 %v1342
        %v1415 = vunpack.c.h.b16 %v1342
        %v1416 = vunpack.c.l.b16 %v1343
        %v1417 = vunpack.c.h.b16 %v1343
        %v1418 = vunpack.c.l.b16 %v1344
        %v1419 = vunpack.c.h.b16 %v1344
        %v1420 = vunpack.c.l.b16 %v1345
        %v1421 = vunpack.c.h.b16 %v1345
        %v1422 = vunpack.c.l.b16 %v1346
        %v1423 = vunpack.c.h.b16 %v1346
        %v1424 = vunpack.c.l.b16 %v1347
        %v1425 = vunpack.c.h.b16 %v1347
        %v1426 = vunpack.c.l.b16 %v1348
        %v1427 = vunpack.c.h.b16 %v1348
        %v1428 = vunpack.c.l.b16 %v1349
        %v1429 = vunpack.c.h.b16 %v1349
        %v1430 = vunpack.c.l.b16 %v1350
        %v1431 = vunpack.c.h.b16 %v1350
        %v1432 = vunpack.c.l.b16 %v1351
        %v1433 = vunpack.c.h.b16 %v1351
        %v1434 = vunpack.c.l.b16 %v1352
        %v1435 = vunpack.c.h.b16 %v1352
        %v1436 = vunpack.c.l.b16 %v1353
        %v1437 = vunpack.c.h.b16 %v1353
        %v1438 = vunpack.c.l.b16 %v1354
        %v1439 = vunpack.c.h.b16 %v1354
        %v1440 = vunpack.c.l.b16 %v1355
        %v1441 = vunpack.c.h.b16 %v1355
        %v1442 = vunpack.c.l.b16 %v1356
        %v1443 = vunpack.c.h.b16 %v1356
        %v1444 = vunpack.c.l.b16 %v1357
        %v1445 = vunpack.c.h.b16 %v1357
        %v1446 = vunpack.c.l.b16 %v1358
        %v1447 = vunpack.c.h.b16 %v1358
        %v1448 = vunpack.c.l.b16 %v1359
        %v1449 = vunpack.c.h.b16 %v1359
        %v1450 = vunpack.c.l.b16 %v1360
        %v1451 = vunpack.c.h.b16 %v1360
        %v1452 = vunpack.c.l.b16 %v1361
        %v1453 = vunpack.c.h.b16 %v1361
        %v1454 = vunpack.c.l.b16 %v1362
        %v1455 = vunpack.c.h.b16 %v1362
        %v1456 = vunpack.c.l.b16 %v1363
        %v1457 = vunpack.c.h.b16 %v1363
        %v1458 = vunpack.c.l.b16 %v1364
        %v1459 = vunpack.c.h.b16 %v1364
        %v1460 = vunpack.c.l.b16 %v1365
        %v1461 = vunpack.c.h.b16 %v1365
        %v1462 = vpack.c.b16 %v1400, %v1398
        %v1463 = vpack.c.b16 %v1401, %v1399
        %v1464 = vpack.c.b16 %v1404, %v1402
        %v1465 = vpack.c.b16 %v1405, %v1403
        %v1466 = vpack.c.b16 %v1408, %v1406
        %v1467 = vpack.c.b16 %v1409, %v1407
        %v1468 = vpack.c.b16 %v1412, %v1410
        %v1469 = vpack.c.b16 %v1413, %v1411
        %v1470 = vpack.c.b16 %v1416, %v1414
        %v1471 = vpack.c.b16 %v1417, %v1415
        %v1472 = vpack.c.b16 %v1420, %v1418
        %v1473 = vpack.c.b16 %v1421, %v1419
        %v1474 = vpack.c.b16 %v1424, %v1422
        %v1475 = vpack.c.b16 %v1425, %v1423
        %v1476 = vpack.c.b16 %v1428, %v1426
        %v1477 = vpack.c.b16 %v1429, %v1427
        %v1478 = vpack.c.b16 %v1432, %v1430
        %v1479 = vpack.c.b16 %v1433, %v1431
        %v1480 = vpack.c.b16 %v1436, %v1434
        %v1481 = vpack.c.b16 %v1437, %v1435
        %v1482 = vpack.c.b16 %v1440, %v1438
        %v1483 = vpack.c.b16 %v1441, %v1439
        %v1484 = vpack.c.b16 %v1444, %v1442
        %v1485 = vpack.c.b16 %v1445, %v1443
        %v1486 = vpack.c.b16 %v1448, %v1446
        %v1487 = vpack.c.b16 %v1449, %v1447
        %v1488 = vpack.c.b16 %v1452, %v1450
        %v1489 = vpack.c.b16 %v1453, %v1451
        %v1490 = vpack.c.b16 %v1456, %v1454
        %v1491 = vpack.c.b16 %v1457, %v1455
        %v1492 = vpack.c.b16 %v1460, %v1458
        %v1493 = vpack.c.b16 %v1461, %v1459
        %1526 = vmatprep.subr.bf16.mxu0 %v1463
        %1527 = vmatpush1.bf16.msra.mxu0 %v1462
        %1528 = vmatprep.subr.bf16.mxu0 %v1465
        %1529 = vmatpush1.bf16.msra.mxu0 %v1464
        %1530 = vmatprep.subr.bf16.mxu0 %v1467
        %1531 = vmatpush1.bf16.msra.mxu0 %v1466
        %1532 = vmatprep.subr.bf16.mxu0 %v1469
        %1533 = vmatpush1.bf16.msra.mxu0 %v1468
        %1534 = vmatprep.subr.bf16.mxu0 %v1471
        %1535 = vmatpush1.bf16.msra.mxu0 %v1470
        %1536 = vmatprep.subr.bf16.mxu0 %v1473
        %1537 = vmatpush1.bf16.msra.mxu0 %v1472
        %1538 = vmatprep.subr.bf16.mxu0 %v1475
        %1539 = vmatpush1.bf16.msra.mxu0 %v1474
        %1540 = vmatprep.subr.bf16.mxu0 %v1477
        %1541 = vmatpush1.bf16.msra.mxu0 %v1476
        %1542 = vmatprep.subr.bf16.mxu0 %v1479
        %1543 = vmatpush1.bf16.msra.mxu0 %v1478
        %1544 = vmatprep.subr.bf16.mxu0 %v1481
        %1545 = vmatpush1.bf16.msra.mxu0 %v1480
        %1546 = vmatprep.subr.bf16.mxu0 %v1483
        %1547 = vmatpush1.bf16.msra.mxu0 %v1482
        %1548 = vmatprep.subr.bf16.mxu0 %v1485
        %1549 = vmatpush1.bf16.msra.mxu0 %v1484
        %1550 = vmatprep.subr.bf16.mxu0 %v1487
        %1551 = vmatpush1.bf16.msra.mxu0 %v1486
        %1552 = vmatprep.subr.bf16.mxu0 %v1489
        %1553 = vmatpush1.bf16.msra.mxu0 %v1488
        %1554 = vmatprep.subr.bf16.mxu0 %v1491
        %1555 = vmatpush1.bf16.msra.mxu0 %v1490
        %1556 = vmatprep.subr.bf16.mxu0 %v1493
        %1557 = vmatpush1.bf16.msra.mxu0 %v1492
        %1558 = vmatprep.mubr.bf16.mxu0 %v377
        %1559 = vmatmul.mubr.bf16.gmra.mrb[0].mxu0 %v376
        %v1560 = vpop.f32.mrb[0].mxu0
        %v1561 = vadd.f32 0.0, %v1560
        %v1562 = vpop.f32.mrb[0].mxu0
        %v1563 = vadd.f32 0.0, %v1562
        %v1564 = vpop.f32.mrb[0].mxu0
        %v1565 = vadd.f32 0.0, %v1564
        %v1566 = vpop.f32.mrb[0].mxu0
        %v1567 = vadd.f32 0.0, %v1566
        %1568 = vdwg.mxu0
        %v1569 = vxor.u32 %v1326, 2147483648
        %v1570 = vxor.u32 %v1328, 2147483648
        %v1571 = vxor.u32 %v1330, 2147483648
        %v1572 = vxor.u32 %v1332, 2147483648
        %v1573 = vmul.f32 %v1569, 1.442695
        %v1574 = vpow.pop %v1573
        %v1575 = vmul.f32 %v1570, 1.442695
        %v1576 = vpow.pop %v1575
        %v1577 = vmul.f32 %v1571, 1.442695
        %v1578 = vpow.pop %v1577
        %v1579 = vmul.f32 %v1572, 1.442695
        %v1580 = vpow.pop %v1579
        %v1581 = vadd.f32 %v1574, 1.0
        %v1582 = vadd.f32 %v1576, 1.0
        %v1583 = vadd.f32 %v1578, 1.0
        %v1584 = vadd.f32 %v1580, 1.0
        %v1585 = vrcp.pop %v1581
        %v1586 = vmul.f32 1.0, %v1585
        %v1587 = vrcp.pop %v1582
        %v1588 = vmul.f32 1.0, %v1587
        %v1589 = vrcp.pop %v1583
        %v1590 = vmul.f32 1.0, %v1589
        %v1591 = vrcp.pop %v1584
        %v1592 = vmul.f32 1.0, %v1591
        %v1593 = vmul.f32 %v1326, %v1586
        %v1594 = vmul.f32 %v1328, %v1588
        %v1595 = vmul.f32 %v1330, %v1590
        %v1596 = vmul.f32 %v1332, %v1592
        %v1597 = vmul.f32 %v1593, %v1561
        %v1598 = vmul.f32 %v1594, %v1563
        %v1599 = vmul.f32 %v1595, %v1565
        %v1600 = vmul.f32 %v1596, %v1567
        %v1601 = vpack.c.bf16 %v1599, %v1597
        %v1602 = vpack.c.bf16 %v1600, %v1598
        %v1603 = vld [vmem:[#allocation8] sm:$0xff]
        %v1604 = vld [vmem:[#allocation8 + $0x8] sm:$0xff]
        %v1605 = vld [vmem:[#allocation8 + $0x10] sm:$0xff]
        %v1606 = vld [vmem:[#allocation8 + $0x18] sm:$0xff]
        %v1607 = vld [vmem:[%s281 + $0x100] sm:$0xff]
        %v1608 = vld [vmem:[%s281 + $0x108] sm:$0xff]
        %v1609 = vld [vmem:[%s281 + $0x110] sm:$0xff]
        %v1610 = vld [vmem:[%s281 + $0x118] sm:$0xff]
        %v1611 = vld [vmem:[%s281 + $0x120] sm:$0xff]
        %v1612 = vld [vmem:[%s281 + $0x128] sm:$0xff]
        %v1613 = vld [vmem:[%s281 + $0x130] sm:$0xff]
        %v1614 = vld [vmem:[%s281 + $0x138] sm:$0xff]
        %v1615 = vld [vmem:[%s281 + $0x140] sm:$0xff]
        %v1616 = vld [vmem:[%s281 + $0x148] sm:$0xff]
        %v1617 = vld [vmem:[%s281 + $0x150] sm:$0xff]
        %v1618 = vld [vmem:[%s281 + $0x158] sm:$0xff]
        %v1619 = vld [vmem:[%s281 + $0x160] sm:$0xff]
        %v1620 = vld [vmem:[%s281 + $0x168] sm:$0xff]
        %v1621 = vld [vmem:[%s281 + $0x170] sm:$0xff]
        %v1622 = vld [vmem:[%s281 + $0x178] sm:$0xff]
        %v1623 = vld [vmem:[%s281 + $0x180] sm:$0xff]
        %v1624 = vld [vmem:[%s281 + $0x188] sm:$0xff]
        %v1625 = vld [vmem:[%s281 + $0x190] sm:$0xff]
        %v1626 = vld [vmem:[%s281 + $0x198] sm:$0xff]
        %v1627 = vld [vmem:[%s281 + $0x1a0] sm:$0xff]
        %v1628 = vld [vmem:[%s281 + $0x1a8] sm:$0xff]
        %v1629 = vld [vmem:[%s281 + $0x1b0] sm:$0xff]
        %v1630 = vld [vmem:[%s281 + $0x1b8] sm:$0xff]
        %v1631 = vld [vmem:[%s281 + $0x1c0] sm:$0xff]
        %v1632 = vld [vmem:[%s281 + $0x1c8] sm:$0xff]
        %v1633 = vld [vmem:[%s281 + $0x1d0] sm:$0xff]
        %v1634 = vld [vmem:[%s281 + $0x1d8] sm:$0xff]
        %v1635 = vld [vmem:[%s281 + $0x1e0] sm:$0xff]
        %v1636 = vld [vmem:[%s281 + $0x1e8] sm:$0xff]
        %v1637 = vld [vmem:[%s281 + $0x1f0] sm:$0xff]
        %v1638 = vld [vmem:[%s281 + $0x1f8] sm:$0xff]
        %v1671 = vunpack.c.l.b16 %v1607
        %v1672 = vunpack.c.h.b16 %v1607
        %v1673 = vunpack.c.l.b16 %v1608
        %v1674 = vunpack.c.h.b16 %v1608
        %v1675 = vunpack.c.l.b16 %v1609
        %v1676 = vunpack.c.h.b16 %v1609
        %v1677 = vunpack.c.l.b16 %v1610
        %v1678 = vunpack.c.h.b16 %v1610
        %v1679 = vunpack.c.l.b16 %v1611
        %v1680 = vunpack.c.h.b16 %v1611
        %v1681 = vunpack.c.l.b16 %v1612
        %v1682 = vunpack.c.h.b16 %v1612
        %v1683 = vunpack.c.l.b16 %v1613
        %v1684 = vunpack.c.h.b16 %v1613
        %v1685 = vunpack.c.l.b16 %v1614
        %v1686 = vunpack.c.h.b16 %v1614
        %v1687 = vunpack.c.l.b16 %v1615
        %v1688 = vunpack.c.h.b16 %v1615
        %v1689 = vunpack.c.l.b16 %v1616
        %v1690 = vunpack.c.h.b16 %v1616
        %v1691 = vunpack.c.l.b16 %v1617
        %v1692 = vunpack.c.h.b16 %v1617
        %v1693 = vunpack.c.l.b16 %v1618
        %v1694 = vunpack.c.h.b16 %v1618
        %v1695 = vunpack.c.l.b16 %v1619
        %v1696 = vunpack.c.h.b16 %v1619
        %v1697 = vunpack.c.l.b16 %v1620
        %v1698 = vunpack.c.h.b16 %v1620
        %v1699 = vunpack.c.l.b16 %v1621
        %v1700 = vunpack.c.h.b16 %v1621
        %v1701 = vunpack.c.l.b16 %v1622
        %v1702 = vunpack.c.h.b16 %v1622
        %v1703 = vunpack.c.l.b16 %v1623
        %v1704 = vunpack.c.h.b16 %v1623
        %v1705 = vunpack.c.l.b16 %v1624
        %v1706 = vunpack.c.h.b16 %v1624
        %v1707 = vunpack.c.l.b16 %v1625
        %v1708 = vunpack.c.h.b16 %v1625
        %v1709 = vunpack.c.l.b16 %v1626
        %v1710 = vunpack.c.h.b16 %v1626
        %v1711 = vunpack.c.l.b16 %v1627
        %v1712 = vunpack.c.h.b16 %v1627
        %v1713 = vunpack.c.l.b16 %v1628
        %v1714 = vunpack.c.h.b16 %v1628
        %v1715 = vunpack.c.l.b16 %v1629
        %v1716 = vunpack.c.h.b16 %v1629
        %v1717 = vunpack.c.l.b16 %v1630
        %v1718 = vunpack.c.h.b16 %v1630
        %v1719 = vunpack.c.l.b16 %v1631
        %v1720 = vunpack.c.h.b16 %v1631
        %v1721 = vunpack.c.l.b16 %v1632
        %v1722 = vunpack.c.h.b16 %v1632
        %v1723 = vunpack.c.l.b16 %v1633
        %v1724 = vunpack.c.h.b16 %v1633
        %v1725 = vunpack.c.l.b16 %v1634
        %v1726 = vunpack.c.h.b16 %v1634
        %v1727 = vunpack.c.l.b16 %v1635
        %v1728 = vunpack.c.h.b16 %v1635
        %v1729 = vunpack.c.l.b16 %v1636
        %v1730 = vunpack.c.h.b16 %v1636
        %v1731 = vunpack.c.l.b16 %v1637
        %v1732 = vunpack.c.h.b16 %v1637
        %v1733 = vunpack.c.l.b16 %v1638
        %v1734 = vunpack.c.h.b16 %v1638
        %v1735 = vpack.c.b16 %v1673, %v1671
        %v1736 = vpack.c.b16 %v1674, %v1672
        %v1737 = vpack.c.b16 %v1677, %v1675
        %v1738 = vpack.c.b16 %v1678, %v1676
        %v1739 = vpack.c.b16 %v1681, %v1679
        %v1740 = vpack.c.b16 %v1682, %v1680
        %v1741 = vpack.c.b16 %v1685, %v1683
        %v1742 = vpack.c.b16 %v1686, %v1684
        %v1743 = vpack.c.b16 %v1689, %v1687
        %v1744 = vpack.c.b16 %v1690, %v1688
        %v1745 = vpack.c.b16 %v1693, %v1691
        %v1746 = vpack.c.b16 %v1694, %v1692
        %v1747 = vpack.c.b16 %v1697, %v1695
        %v1748 = vpack.c.b16 %v1698, %v1696
        %v1749 = vpack.c.b16 %v1701, %v1699
        %v1750 = vpack.c.b16 %v1702, %v1700
        %v1751 = vpack.c.b16 %v1705, %v1703
        %v1752 = vpack.c.b16 %v1706, %v1704
        %v1753 = vpack.c.b16 %v1709, %v1707
        %v1754 = vpack.c.b16 %v1710, %v1708
        %v1755 = vpack.c.b16 %v1713, %v1711
        %v1756 = vpack.c.b16 %v1714, %v1712
        %v1757 = vpack.c.b16 %v1717, %v1715
        %v1758 = vpack.c.b16 %v1718, %v1716
        %v1759 = vpack.c.b16 %v1721, %v1719
        %v1760 = vpack.c.b16 %v1722, %v1720
        %v1761 = vpack.c.b16 %v1725, %v1723
        %v1762 = vpack.c.b16 %v1726, %v1724
        %v1763 = vpack.c.b16 %v1729, %v1727
        %v1764 = vpack.c.b16 %v1730, %v1728
        %v1765 = vpack.c.b16 %v1733, %v1731
        %v1766 = vpack.c.b16 %v1734, %v1732
        %1799 = vmatprep.subr.bf16.mxu0 %v1736
        %1800 = vmatpush1.bf16.msra.mxu0 %v1735
        %1801 = vmatprep.subr.bf16.mxu0 %v1738
        %1802 = vmatpush1.bf16.msra.mxu0 %v1737
        %1803 = vmatprep.subr.bf16.mxu0 %v1740
        %1804 = vmatpush1.bf16.msra.mxu0 %v1739
        %1805 = vmatprep.subr.bf16.mxu0 %v1742
        %1806 = vmatpush1.bf16.msra.mxu0 %v1741
        %1807 = vmatprep.subr.bf16.mxu0 %v1744
        %1808 = vmatpush1.bf16.msra.mxu0 %v1743
        %1809 = vmatprep.subr.bf16.mxu0 %v1746
        %1810 = vmatpush1.bf16.msra.mxu0 %v1745
        %1811 = vmatprep.subr.bf16.mxu0 %v1748
        %1812 = vmatpush1.bf16.msra.mxu0 %v1747
        %1813 = vmatprep.subr.bf16.mxu0 %v1750
        %1814 = vmatpush1.bf16.msra.mxu0 %v1749
        %1815 = vmatprep.subr.bf16.mxu0 %v1752
        %1816 = vmatpush1.bf16.msra.mxu0 %v1751
        %1817 = vmatprep.subr.bf16.mxu0 %v1754
        %1818 = vmatpush1.bf16.msra.mxu0 %v1753
        %1819 = vmatprep.subr.bf16.mxu0 %v1756
        %1820 = vmatpush1.bf16.msra.mxu0 %v1755
        %1821 = vmatprep.subr.bf16.mxu0 %v1758
        %1822 = vmatpush1.bf16.msra.mxu0 %v1757
        %1823 = vmatprep.subr.bf16.mxu0 %v1760
        %1824 = vmatpush1.bf16.msra.mxu0 %v1759
        %1825 = vmatprep.subr.bf16.mxu0 %v1762
        %1826 = vmatpush1.bf16.msra.mxu0 %v1761
        %1827 = vmatprep.subr.bf16.mxu0 %v1764
        %1828 = vmatpush1.bf16.msra.mxu0 %v1763
        %1829 = vmatprep.subr.bf16.mxu0 %v1766
        %1830 = vmatpush1.bf16.msra.mxu0 %v1765
        %1831 = vmatprep.mubr.bf16.mxu0 %v1602
        %1832 = vmatmul.mubr.bf16.gmra.mrb[0].mxu0 %v1601
        %v1833 = vpop.f32.mrb[0].mxu0
        %v1834 = vadd.f32 0.0, %v1833
        %v1835 = vpop.f32.mrb[0].mxu0
        %v1836 = vadd.f32 0.0, %v1835
        %v1837 = vpop.f32.mrb[0].mxu0
        %v1838 = vadd.f32 0.0, %v1837
        %v1839 = vpop.f32.mrb[0].mxu0
        %v1840 = vadd.f32 0.0, %v1839
        %1841 = vdwg.mxu0
        %v1842 = vadd.f32 %v1603, %v1834
        %v1843 = vadd.f32 %v1604, %v1836
        %v1844 = vadd.f32 %v1605, %v1838
        %v1845 = vadd.f32 %v1606, %v1840
        %1846 = vst [vmem:[#allocation8] sm:$0xff] %v1842
        %1847 = vst [vmem:[#allocation8 + $0x8] sm:$0xff] %v1843
        %1848 = vst [vmem:[#allocation8 + $0x10] sm:$0xff] %v1844
        %1849 = vst [vmem:[#allocation8 + $0x18] sm:$0xff] %v1845
        // Predicated region
        $region53: #{_qwen2_mlp_core.1} parent=35 // pred_check
          %p1850 = pneg %p156
        $region54: #{_qwen2_mlp_core.1} parent=35 // pred_check_branch
          %1852 = sbr.rel (%p1850) target = $region56
        $region55: #{_qwen2_mlp_core.1} parent=35 // pred_region
          %s1853 = smul.u32 2, %s26
          %s1855 = ssub.s32 512, 512
          %1856 = vsyncadd [#allocation4], %s1855
          %s1857 = smul.addr %s1853, 2
          %s1858 = smul.addr %s1857, 128
          %s1859 = scalar_lea.hbm %s4, %s1858
          %s1860 = sshll.u32 [#allocation8], 4
          %s1861 = int_to_ptr.vmem [resolvable:$true] %s1860
          %1866 = dma.vmem_to_hbm [thread:$0]  %s1861, 512, %s1859, [#allocation4], 256, 256, 16
        $region56: #{_qwen2_mlp_core.1} parent=35 // pred_fallthru
          _
        // Predicated region
        $region57: #{_qwen2_mlp_core.1} parent=35 // pred_check
          %p1867 = pneg %p156
        $region58: #{_qwen2_mlp_core.1} parent=35 // pred_check_branch
          %1869 = sbr.rel (%p1867) target = $region60
        $region59: #{_qwen2_mlp_core.1} parent=35 // pred_region
          %1870 = dma.done [#allocation4], 512
        $region60: #{_qwen2_mlp_core.1} parent=35 // pred_fallthru
          _
      $region36: #{_qwen2_mlp_core.1} parent=5 // pred_fallthru
        _
      %p1871 = scmp.le.s32.totalorder 2, %s17
      // Predicated region
      $region61: #{_qwen2_mlp_core.1} parent=5 // pred_check
        %p1872 = pneg %p1871
      $region62: #{_qwen2_mlp_core.1} parent=5 // pred_check_branch
        %1874 = sbr.rel (%p1872) target = $region64
      $region63: #{_qwen2_mlp_core.1} parent=5 // pred_region
        %s1875 = ssub.s32 %s17, 2
      $region64: #{_qwen2_mlp_core.1} parent=5 // pred_fallthru
        _
    $region6: #{_qwen2_mlp_core.1} parent=1 // loop_footer
      %s21 = sadd.s32 1, %s17
    $region7: #{_qwen2_mlp_core.1} parent=1 // loop_footer_branch
      %16 = sbr.rel target = $region3
    $region8: #{_qwen2_mlp_core.1} parent=1 // loop_exit
      _
    %1876 = vsyncpa [#allocation3], 1
    %s1877 = scalar_lea.sflag [#allocation3], 1
    %1878 = vsyncpa %s1877, 1
    %1879 = vsyncpa [#allocation6], 1
    %s1880 = scalar_lea.sflag [#allocation6], 1
    %1881 = vsyncpa %s1880, 1
    %1882 = vsyncpa [#allocation4], 1
    %s1883 = scalar_lea.sflag [#allocation4], 1
    %1884 = vsyncpa %s1883, 1

</llo_original>
